<compile_context>
chip_gen: v6e
topology: v6e:2x2x1
jax: 0.10.0
libtpu: 0.0.40
codegen_flags: <defaults>
</compile_context>

<pallas_src>
import numpy as np
import jax
import jax.numpy as jnp
from jax.experimental import pallas as pl
from jax.experimental.pallas import tpu as pltpu

GP = 8    # module-level `gp`
PT = 16   # module-level `pt`
LANE = 128


def _round_up(x, m):
    return ((x + m - 1) // m) * m


def _conv_adapt_kernel(x_ref, w_ref, b_ref, o_ref, xcat_ref, acc_ref):
    # x_ref:    (1, TH+2, W+2, Cin)  bf16 zero-padded NHWC row tile (+1 halo row/col)
    # w_ref:    (3, 3*Cin, Cp)       bf16 dense block-diag weights, K ordered (kw, cin),
    #                                1x1 pwc folded into the (kh=1, kw=1) rows
    # b_ref:    (1, Cp)              f32 combined bias (gwc + pwc)
    # o_ref:    (1, TH*W, Cp)        f32 output tile (Cp = Cout padded to 128)
    # xcat_ref: (TH*W, 3*Cin)        bf16 scratch: kw-unfolded input slab
    # acc_ref:  (TH*W, Cp)           f32 accumulator scratch
    _, thp2, wp2, cin = x_ref.shape
    th, w = thp2 - 2, wp2 - 2

    for kh in range(3):
        # Fold the 3 kw shifts into the contraction dim: build (TH*W, 3*Cin).
        for kw in range(3):
            xcat_ref[:, kw * cin:(kw + 1) * cin] = (
                x_ref[0, kh:kh + th, kw:kw + w, :].reshape(th * w, cin))
        part = jnp.dot(xcat_ref[...], w_ref[kh],
                       preferred_element_type=jnp.float32)
        if kh == 0:
            acc_ref[...] = part          # first tap: plain assign (no zero-init pass)
        else:
            acc_ref[...] += part         # in-place accumulate in VMEM scratch

    o_ref[0] = (acc_ref[...] + b_ref[...]).astype(o_ref.dtype)


def _grouped_to_dense(wg, groups):
    """(Cout, Cin/groups, kh, kw) grouped weight -> dense (kh, kw, Cin, Cout)."""
    cout, cig, kh, kw = wg.shape
    cog = cout // groups
    wr = wg.reshape(groups, cog, cig, kh, kw)
    eye = jnp.eye(groups, dtype=wg.dtype)
    # dense[k,l,g,i,h,o] = eye[g,h] * wr[h,o,i,k,l]  (block-diagonal expansion)
    dense = jnp.einsum('gh,hoikl->klgiho', eye, wr)
    return dense.reshape(kh, kw, groups * cig, cout)


def _pick_row_tile(H, W, Cin, Cp, budget_bytes=6 << 20):
    """Largest row tile dividing H whose per-step buffers fit the VMEM budget."""
    best = 1
    for th in range(1, H + 1):
        if H % th:
            continue
        need = (2 * ((th + 2) * (W + 2) * Cin * 2 + th * W * Cp * 4)   # dbl-buffered in/out
                + th * W * 3 * Cin * 2 + th * W * Cp * 4)              # scratches
        if need <= budget_bytes:
            best = th
    return best


def conv_adapt(x_nchw, w_gwc, b_gwc, w_pwc, b_pwc, p, row_tile=None):
    """Forward pass of ConvAdapt.  x_nchw: (N, Cin, H, W) float32, returns NCHW."""
    N, Cin, H, W = x_nchw.shape
    Cout = w_gwc.shape[0]
    g3 = p // GP
    g1 = p // PT
    Cp = _round_up(Cout, LANE)        # lane-dense output channels

    # --- glue: dense block-diagonal weights; fold 1x1 pwc into the centre tap ---
    w3 = _grouped_to_dense(w_gwc, g3)                 # (3, 3, Cin, Cout)
    w1 = _grouped_to_dense(w_pwc, g1)[0, 0]           # (Cin, Cout)
    w3 = w3.at[1, 1].add(w1)                          # centre tap reads same window as 1x1
    w3 = w3.reshape(3, 3 * Cin, Cout)                 # K ordered (kw, cin)
    w3 = jnp.pad(w3, ((0, 0), (0, 0), (0, Cp - Cout))).astype(jnp.bfloat16)
    bias = jnp.pad((b_gwc + b_pwc).astype(jnp.float32), (0, Cp - Cout)).reshape(1, Cp)

    # --- glue: NCHW -> NHWC (bf16), zero-pad spatial dims, pre-tile rows w/ halo ---
    x = jnp.transpose(x_nchw, (0, 2, 3, 1)).astype(jnp.bfloat16)
    xpad = jnp.pad(x, ((0, 0), (1, 1), (1, 1), (0, 0)))

    TH = row_tile if row_tile is not None else _pick_row_tile(H, W, Cin, Cp)
    assert H % TH == 0, "row_tile must divide H"
    nT = H // TH
    tiles = jnp.stack([xpad[:, t * TH:t * TH + TH + 2] for t in range(nT)], axis=1)
    tiles = tiles.reshape(N * nT, TH + 2, W + 2, Cin)

    # advisory cost + explicit VMEM budget
    flops = 2 * (N * nT) * (TH * W) * (3 * Cin) * Cp * 3
    bytes_accessed = (tiles.size * 2 + w3.size * 2 + bias.size * 4
                      + (N * nT) * TH * W * Cp * 4)
    vmem_need = (2 * ((TH + 2) * (W + 2) * Cin * 2 + TH * W * Cp * 4
                      + w3.size * 2 + Cp * 4)
                 + TH * W * 3 * Cin * 2 + TH * W * Cp * 4)
    vmem_limit = int(min(max(4 * vmem_need, 16 << 20), 48 << 20))

    out = pl.pallas_call(
        _conv_adapt_kernel,
        out_shape=jax.ShapeDtypeStruct((N * nT, TH * W, Cp), jnp.float32),
        grid_spec=pltpu.PrefetchScalarGridSpec(
            num_scalar_prefetch=0,
            grid=(N * nT,),
            in_specs=[
                pl.BlockSpec((1, TH + 2, W + 2, Cin), lambda i: (i, 0, 0, 0)),
                pl.BlockSpec((3, 3 * Cin, Cp), lambda i: (0, 0, 0)),
                pl.BlockSpec((1, Cp), lambda i: (0, 0)),
            ],
            out_specs=pl.BlockSpec((1, TH * W, Cp), lambda i: (i, 0, 0)),
            scratch_shapes=[
                pltpu.VMEM((TH * W, 3 * Cin), jnp.bfloat16),   # kw-unfolded input slab
                pltpu.VMEM((TH * W, Cp), jnp.float32),         # f32 accumulator
            ],
        ),
        compiler_params=pltpu.CompilerParams(
            dimension_semantics=("parallel",),
            vmem_limit_bytes=vmem_limit,
        ),
        cost_estimate=pl.CostEstimate(
            flops=flops, transcendentals=0, bytes_accessed=bytes_accessed),
    )(tiles, w3, bias)

    out = out.reshape(N, H, W, Cp)[..., :Cout]        # drop lane padding
    return jnp.transpose(out, (0, 3, 1, 2)).astype(x_nchw.dtype)   # back to NCHW


def _reference(x, w_gwc, b_gwc, w_pwc, b_pwc, g3, g1):
    """Pure-JAX reference mirroring torch.nn.Conv2d semantics (NCHW / OIHW)."""
    dn = ('NCHW', 'OIHW', 'NCHW')
    y3 = jax.lax.conv_general_dilated(
        x, w_gwc, (1, 1), ((1, 1), (1, 1)),
        dimension_numbers=dn, feature_group_count=g3) + b_gwc[None, :, None, None]
    y1 = jax.lax.conv_general_dilated(
        x, w_pwc, (1, 1), ((0, 0), (0, 0)),
        dimension_numbers=dn, feature_group_count=g1) + b_pwc[None, :, None, None]
    return y3 + y1


if __name__ == "__main__":
    # small shapes consistent with the module: p must divide by gp=8 and pt=16
    N, Cin, Cout, H, W, p = 2, 16, 16, 16, 16, 16
    g3, g1 = p // GP, p // PT            # gwc groups=2, pwc groups=1

    key = jax.random.PRNGKey(0)
    k1, k2, k3, k4, k5 = jax.random.split(key, 5)
    x = jax.random.normal(k1, (N, Cin, H, W), jnp.float32)
    w_gwc = 0.1 * jax.random.normal(k2, (Cout, Cin // g3, 3, 3), jnp.float32)
    b_gwc = 0.1 * jax.random.normal(k3, (Cout,), jnp.float32)
    w_pwc = 0.1 * jax.random.normal(k4, (Cout, Cin // g1, 1, 1), jnp.float32)
    b_pwc = 0.1 * jax.random.normal(k5, (Cout,), jnp.float32)

    fwd = jax.jit(conv_adapt, static_argnums=(5, 6))
    out = fwd(x, w_gwc, b_gwc, w_pwc, b_pwc, p, 8)   # row_tile=8 -> grid=(4,), spatial tiling
    out = jax.block_until_ready(out)

    ref = _reference(x, w_gwc, b_gwc, w_pwc, b_pwc, g3, g1)
    # bf16 activations/weights with f32 accumulation -> relaxed tolerance
    np.testing.assert_allclose(np.asarray(out), np.asarray(ref),
                               atol=5e-2, rtol=5e-2)
    print("KERNEL_OK")
</pallas_src>

<mosaic_0001>
module attributes {stable_mosaic.version = 11 : i64} {
  func.func @_conv_adapt_kernel(%arg0: i32, %arg1: memref<1x10x18x16xbf16, #tpu.memory_space<vmem>>, %arg2: memref<3x48x128xbf16, #tpu.memory_space<vmem>>, %arg3: memref<1x128xf32, #tpu.memory_space<vmem>>, %arg4: memref<1x128x128xf32, #tpu.memory_space<vmem>>, %arg5: memref<128x48xbf16, #tpu.memory_space<vmem>>, %arg6: memref<128x128xf32, #tpu.memory_space<vmem>>) attributes {dimension_semantics = [#tpu.dimension_semantics<parallel>], iteration_bounds = array<i64: 4>, scalar_prefetch = 0 : i64, scratch_operands = 2 : i64, tpu.core_type = #tpu.core_type<tc>, window_params = [{transform_indices = @transform_0, window_bounds = array<i64: 1, 10, 18, 16>}, {pipeline_mode = #tpu.pipeline_mode<synchronous>, transform_indices = @transform_1, window_bounds = array<i64: 3, 48, 128>}, {pipeline_mode = #tpu.pipeline_mode<synchronous>, transform_indices = @transform_2, window_bounds = array<i64: 1, 128>}, {transform_indices = @transform_3, window_bounds = array<i64: 1, 128, 128>}]} {
    %c0 = arith.constant 0 : index
    %c0_0 = arith.constant 0 : index
    %c0_1 = arith.constant 0 : index
    %c0_2 = arith.constant 0 : index
    %0 = vector.load %arg1[%c0, %c0_0, %c0_1, %c0_2] : memref<1x10x18x16xbf16, #tpu.memory_space<vmem>>, vector<1x8x16x16xbf16>
    %1 = vector.shape_cast %0 : vector<1x8x16x16xbf16> to vector<8x16x16xbf16>
    %2 = vector.shape_cast %1 : vector<8x16x16xbf16> to vector<128x16xbf16>
    %c0_3 = arith.constant 0 : index
    %c0_4 = arith.constant 0 : index
    %3 = vector.load %arg5[%c0_3, %c0_4] : memref<128x48xbf16, #tpu.memory_space<vmem>>, vector<128x16xbf16>
    tpu.vector_store %arg5[%c0_3, %c0_4], %2 {strides = array<i32>} : memref<128x48xbf16, #tpu.memory_space<vmem>>, vector<128x16xbf16>,
    %c0_5 = arith.constant 0 : index
    %c0_6 = arith.constant 0 : index
    %c1 = arith.constant 1 : index
    %c0_7 = arith.constant 0 : index
    %4 = vector.load %arg1[%c0_5, %c0_6, %c1, %c0_7] : memref<1x10x18x16xbf16, #tpu.memory_space<vmem>>, vector<1x8x16x16xbf16>
    %5 = vector.shape_cast %4 : vector<1x8x16x16xbf16> to vector<8x16x16xbf16>
    %6 = vector.shape_cast %5 : vector<8x16x16xbf16> to vector<128x16xbf16>
    %c0_8 = arith.constant 0 : index
    %c16 = arith.constant 16 : index
    %7 = vector.load %arg5[%c0_8, %c16] : memref<128x48xbf16, #tpu.memory_space<vmem>>, vector<128x16xbf16>
    tpu.vector_store %arg5[%c0_8, %c16], %6 {strides = array<i32>} : memref<128x48xbf16, #tpu.memory_space<vmem>>, vector<128x16xbf16>,
    %c0_9 = arith.constant 0 : index
    %c0_10 = arith.constant 0 : index
    %c2 = arith.constant 2 : index
    %c0_11 = arith.constant 0 : index
    %8 = vector.load %arg1[%c0_9, %c0_10, %c2, %c0_11] : memref<1x10x18x16xbf16, #tpu.memory_space<vmem>>, vector<1x8x16x16xbf16>
    %9 = vector.shape_cast %8 : vector<1x8x16x16xbf16> to vector<8x16x16xbf16>
    %10 = vector.shape_cast %9 : vector<8x16x16xbf16> to vector<128x16xbf16>
    %c0_12 = arith.constant 0 : index
    %c32 = arith.constant 32 : index
    %11 = vector.load %arg5[%c0_12, %c32] : memref<128x48xbf16, #tpu.memory_space<vmem>>, vector<128x16xbf16>
    tpu.vector_store %arg5[%c0_12, %c32], %10 {strides = array<i32>} : memref<128x48xbf16, #tpu.memory_space<vmem>>, vector<128x16xbf16>,
    %c0_13 = arith.constant 0 : index
    %c0_14 = arith.constant 0 : index
    %12 = vector.load %arg5[%c0_13, %c0_14] : memref<128x48xbf16, #tpu.memory_space<vmem>>, vector<128x48xbf16>
    %c0_15 = arith.constant 0 : index
    %c0_16 = arith.constant 0 : index
    %c0_17 = arith.constant 0 : index
    %13 = vector.load %arg2[%c0_15, %c0_16, %c0_17] : memref<3x48x128xbf16, #tpu.memory_space<vmem>>, vector<1x48x128xbf16>
    %14 = vector.shape_cast %13 : vector<1x48x128xbf16> to vector<48x128xbf16>
    %cst = arith.constant dense<0.000000e+00> : vector<128x128xf32>
    %15 = tpu.matmul %12, %14, %cst {dimension_numbers = #tpu.dot_dimension_numbers<[1], [0], [0], [1], [0, 0, 1, 1], [], []>} : vector<128x48xbf16>, vector<48x128xbf16>, vector<128x128xf32> -> vector<128x128xf32>
    %c0_18 = arith.constant 0 : index
    %c0_19 = arith.constant 0 : index
    %16 = vector.load %arg6[%c0_18, %c0_19] : memref<128x128xf32, #tpu.memory_space<vmem>>, vector<128x128xf32>
    tpu.vector_store %arg6[%c0_18, %c0_19], %15 {strides = array<i32>} : memref<128x128xf32, #tpu.memory_space<vmem>>, vector<128x128xf32>,
    %c0_20 = arith.constant 0 : index
    %c1_21 = arith.constant 1 : index
    %c0_22 = arith.constant 0 : index
    %c0_23 = arith.constant 0 : index
    %17 = vector.load %arg1[%c0_20, %c1_21, %c0_22, %c0_23] : memref<1x10x18x16xbf16, #tpu.memory_space<vmem>>, vector<1x8x16x16xbf16>
    %18 = vector.shape_cast %17 : vector<1x8x16x16xbf16> to vector<8x16x16xbf16>
    %19 = vector.shape_cast %18 : vector<8x16x16xbf16> to vector<128x16xbf16>
    %c0_24 = arith.constant 0 : index
    %c0_25 = arith.constant 0 : index
    %20 = vector.load %arg5[%c0_24, %c0_25] : memref<128x48xbf16, #tpu.memory_space<vmem>>, vector<128x16xbf16>
    tpu.vector_store %arg5[%c0_24, %c0_25], %19 {strides = array<i32>} : memref<128x48xbf16, #tpu.memory_space<vmem>>, vector<128x16xbf16>,
    %c0_26 = arith.constant 0 : index
    %c1_27 = arith.constant 1 : index
    %c1_28 = arith.constant 1 : index
    %c0_29 = arith.constant 0 : index
    %21 = vector.load %arg1[%c0_26, %c1_27, %c1_28, %c0_29] : memref<1x10x18x16xbf16, #tpu.memory_space<vmem>>, vector<1x8x16x16xbf16>
    %22 = vector.shape_cast %21 : vector<1x8x16x16xbf16> to vector<8x16x16xbf16>
    %23 = vector.shape_cast %22 : vector<8x16x16xbf16> to vector<128x16xbf16>
    %c0_30 = arith.constant 0 : index
    %c16_31 = arith.constant 16 : index
    %24 = vector.load %arg5[%c0_30, %c16_31] : memref<128x48xbf16, #tpu.memory_space<vmem>>, vector<128x16xbf16>
    tpu.vector_store %arg5[%c0_30, %c16_31], %23 {strides = array<i32>} : memref<128x48xbf16, #tpu.memory_space<vmem>>, vector<128x16xbf16>,
    %c0_32 = arith.constant 0 : index
    %c1_33 = arith.constant 1 : index
    %c2_34 = arith.constant 2 : index
    %c0_35 = arith.constant 0 : index
    %25 = vector.load %arg1[%c0_32, %c1_33, %c2_34, %c0_35] : memref<1x10x18x16xbf16, #tpu.memory_space<vmem>>, vector<1x8x16x16xbf16>
    %26 = vector.shape_cast %25 : vector<1x8x16x16xbf16> to vector<8x16x16xbf16>
    %27 = vector.shape_cast %26 : vector<8x16x16xbf16> to vector<128x16xbf16>
    %c0_36 = arith.constant 0 : index
    %c32_37 = arith.constant 32 : index
    %28 = vector.load %arg5[%c0_36, %c32_37] : memref<128x48xbf16, #tpu.memory_space<vmem>>, vector<128x16xbf16>
    tpu.vector_store %arg5[%c0_36, %c32_37], %27 {strides = array<i32>} : memref<128x48xbf16, #tpu.memory_space<vmem>>, vector<128x16xbf16>,
    %c0_38 = arith.constant 0 : index
    %c0_39 = arith.constant 0 : index
    %29 = vector.load %arg5[%c0_38, %c0_39] : memref<128x48xbf16, #tpu.memory_space<vmem>>, vector<128x48xbf16>
    %c1_40 = arith.constant 1 : index
    %c0_41 = arith.constant 0 : index
    %c0_42 = arith.constant 0 : index
    %30 = vector.load %arg2[%c1_40, %c0_41, %c0_42] : memref<3x48x128xbf16, #tpu.memory_space<vmem>>, vector<1x48x128xbf16>
    %31 = vector.shape_cast %30 : vector<1x48x128xbf16> to vector<48x128xbf16>
    %cst_43 = arith.constant dense<0.000000e+00> : vector<128x128xf32>
    %32 = tpu.matmul %29, %31, %cst_43 {dimension_numbers = #tpu.dot_dimension_numbers<[1], [0], [0], [1], [0, 0, 1, 1], [], []>} : vector<128x48xbf16>, vector<48x128xbf16>, vector<128x128xf32> -> vector<128x128xf32>
    %c0_44 = arith.constant 0 : index
    %c0_45 = arith.constant 0 : index
    %33 = vector.load %arg6[%c0_44, %c0_45] : memref<128x128xf32, #tpu.memory_space<vmem>>, vector<128x128xf32>
    %34 = arith.addf %33, %32 : vector<128x128xf32>
    %c0_46 = arith.constant 0 : index
    %c0_47 = arith.constant 0 : index
    %35 = vector.load %arg6[%c0_46, %c0_47] : memref<128x128xf32, #tpu.memory_space<vmem>>, vector<128x128xf32>
    tpu.vector_store %arg6[%c0_46, %c0_47], %34 {strides = array<i32>} : memref<128x128xf32, #tpu.memory_space<vmem>>, vector<128x128xf32>,
    %c0_48 = arith.constant 0 : index
    %c2_49 = arith.constant 2 : index
    %c0_50 = arith.constant 0 : index
    %c0_51 = arith.constant 0 : index
    %36 = vector.load %arg1[%c0_48, %c2_49, %c0_50, %c0_51] : memref<1x10x18x16xbf16, #tpu.memory_space<vmem>>, vector<1x8x16x16xbf16>
    %37 = vector.shape_cast %36 : vector<1x8x16x16xbf16> to vector<8x16x16xbf16>
    %38 = vector.shape_cast %37 : vector<8x16x16xbf16> to vector<128x16xbf16>
    %c0_52 = arith.constant 0 : index
    %c0_53 = arith.constant 0 : index
    %39 = vector.load %arg5[%c0_52, %c0_53] : memref<128x48xbf16, #tpu.memory_space<vmem>>, vector<128x16xbf16>
    tpu.vector_store %arg5[%c0_52, %c0_53], %38 {strides = array<i32>} : memref<128x48xbf16, #tpu.memory_space<vmem>>, vector<128x16xbf16>,
    %c0_54 = arith.constant 0 : index
    %c2_55 = arith.constant 2 : index
    %c1_56 = arith.constant 1 : index
    %c0_57 = arith.constant 0 : index
    %40 = vector.load %arg1[%c0_54, %c2_55, %c1_56, %c0_57] : memref<1x10x18x16xbf16, #tpu.memory_space<vmem>>, vector<1x8x16x16xbf16>
    %41 = vector.shape_cast %40 : vector<1x8x16x16xbf16> to vector<8x16x16xbf16>
    %42 = vector.shape_cast %41 : vector<8x16x16xbf16> to vector<128x16xbf16>
    %c0_58 = arith.constant 0 : index
    %c16_59 = arith.constant 16 : index
    %43 = vector.load %arg5[%c0_58, %c16_59] : memref<128x48xbf16, #tpu.memory_space<vmem>>, vector<128x16xbf16>
    tpu.vector_store %arg5[%c0_58, %c16_59], %42 {strides = array<i32>} : memref<128x48xbf16, #tpu.memory_space<vmem>>, vector<128x16xbf16>,
    %c0_60 = arith.constant 0 : index
    %c2_61 = arith.constant 2 : index
    %c2_62 = arith.constant 2 : index
    %c0_63 = arith.constant 0 : index
    %44 = vector.load %arg1[%c0_60, %c2_61, %c2_62, %c0_63] : memref<1x10x18x16xbf16, #tpu.memory_space<vmem>>, vector<1x8x16x16xbf16>
    %45 = vector.shape_cast %44 : vector<1x8x16x16xbf16> to vector<8x16x16xbf16>
    %46 = vector.shape_cast %45 : vector<8x16x16xbf16> to vector<128x16xbf16>
    %c0_64 = arith.constant 0 : index
    %c32_65 = arith.constant 32 : index
    %47 = vector.load %arg5[%c0_64, %c32_65] : memref<128x48xbf16, #tpu.memory_space<vmem>>, vector<128x16xbf16>
    tpu.vector_store %arg5[%c0_64, %c32_65], %46 {strides = array<i32>} : memref<128x48xbf16, #tpu.memory_space<vmem>>, vector<128x16xbf16>,
    %c0_66 = arith.constant 0 : index
    %c0_67 = arith.constant 0 : index
    %48 = vector.load %arg5[%c0_66, %c0_67] : memref<128x48xbf16, #tpu.memory_space<vmem>>, vector<128x48xbf16>
    %c2_68 = arith.constant 2 : index
    %c0_69 = arith.constant 0 : index
    %c0_70 = arith.constant 0 : index
    %49 = vector.load %arg2[%c2_68, %c0_69, %c0_70] : memref<3x48x128xbf16, #tpu.memory_space<vmem>>, vector<1x48x128xbf16>
    %50 = vector.shape_cast %49 : vector<1x48x128xbf16> to vector<48x128xbf16>
    %cst_71 = arith.constant dense<0.000000e+00> : vector<128x128xf32>
    %51 = tpu.matmul %48, %50, %cst_71 {dimension_numbers = #tpu.dot_dimension_numbers<[1], [0], [0], [1], [0, 0, 1, 1], [], []>} : vector<128x48xbf16>, vector<48x128xbf16>, vector<128x128xf32> -> vector<128x128xf32>
    %c0_72 = arith.constant 0 : index
    %c0_73 = arith.constant 0 : index
    %52 = vector.load %arg6[%c0_72, %c0_73] : memref<128x128xf32, #tpu.memory_space<vmem>>, vector<128x128xf32>
    %53 = arith.addf %52, %51 : vector<128x128xf32>
    %c0_74 = arith.constant 0 : index
    %c0_75 = arith.constant 0 : index
    %54 = vector.load %arg6[%c0_74, %c0_75] : memref<128x128xf32, #tpu.memory_space<vmem>>, vector<128x128xf32>
    tpu.vector_store %arg6[%c0_74, %c0_75], %53 {strides = array<i32>} : memref<128x128xf32, #tpu.memory_space<vmem>>, vector<128x128xf32>,
    %c0_76 = arith.constant 0 : index
    %c0_77 = arith.constant 0 : index
    %55 = vector.load %arg6[%c0_76, %c0_77] : memref<128x128xf32, #tpu.memory_space<vmem>>, vector<128x128xf32>
    %c0_78 = arith.constant 0 : index
    %c0_79 = arith.constant 0 : index
    %56 = vector.load %arg3[%c0_78, %c0_79] : memref<1x128xf32, #tpu.memory_space<vmem>>, vector<1x128xf32>
    %57 = vector.broadcast %56 : vector<1x128xf32> to vector<128x128xf32>
    %58 = arith.addf %55, %57 : vector<128x128xf32>
    %c0_80 = arith.constant 0 : index
    %c0_81 = arith.constant 0 : index
    %c0_82 = arith.constant 0 : index
    %59 = vector.load %arg4[%c0_80, %c0_81, %c0_82] : memref<1x128x128xf32, #tpu.memory_space<vmem>>, vector<1x128x128xf32>
    %60 = vector.shape_cast %59 : vector<1x128x128xf32> to vector<128x128xf32>
    %61 = vector.shape_cast %58 : vector<128x128xf32> to vector<1x128x128xf32>
    tpu.vector_store %arg4[%c0_80, %c0_81, %c0_82], %61 {strides = array<i32>} : memref<1x128x128xf32, #tpu.memory_space<vmem>>, vector<1x128x128xf32>,
    return
  }
  func.func @transform_0(%arg0: i32) -> (i32, i32, i32, i32) {
    %c0_i32 = arith.constant 0 : i32
    %c0_i32_0 = arith.constant 0 : i32
    %c0_i32_1 = arith.constant 0 : i32
    %c0_i32_2 = arith.constant 0 : i32
    return %arg0, %c0_i32, %c0_i32_0, %c0_i32_1 : i32, i32, i32, i32
  }
  func.func @transform_1(%arg0: i32) -> (i32, i32, i32) {
    %c0_i32 = arith.constant 0 : i32
    %c0_i32_0 = arith.constant 0 : i32
    %c0_i32_1 = arith.constant 0 : i32
    %c0_i32_2 = arith.constant 0 : i32
    return %c0_i32, %c0_i32_0, %c0_i32_1 : i32, i32, i32
  }
  func.func @transform_2(%arg0: i32) -> (i32, i32) {
    %c0_i32 = arith.constant 0 : i32
    %c0_i32_0 = arith.constant 0 : i32
    %c0_i32_1 = arith.constant 0 : i32
    return %c0_i32, %c0_i32_0 : i32, i32
  }
  func.func @transform_3(%arg0: i32) -> (i32, i32, i32) {
    %c0_i32 = arith.constant 0 : i32
    %c0_i32_0 = arith.constant 0 : i32
    %c0_i32_1 = arith.constant 0 : i32
    return %arg0, %c0_i32, %c0_i32_0 : i32, i32, i32
  }
}

</mosaic_0001>

<llo_original>
// kernel: conv_adapt.1
$region0: #{conv_adapt.1}
  #allocation0 [shape = 'u32[]', space=smem, size = 0x4, offset = 0x4, fixed_abs, tag = 'smem constant byte address 0x4 - core index']
  #allocation1 [shape = 'u32[144,128]{1,0:T(1,128)}', space=vmem, size = 0x12000, scoped, tag = 'internal scratch']
  #allocation2 [shape = 'bf16[128,48]{1,0:T(8,128)(2,1)}', space=vmem, size = 0x8000, scoped, tag = 'scratch operand']
  #allocation3 [shape = 'f32[128,128]{1,0:T(8,128)}', space=vmem, size = 0x10000, scoped, tag = 'scratch operand']
  %s0 = inlined_call_operand.vmem [shape: bf16[4,10,18,16], index: 0, kind: input, shape index: {}]
  %s1 = inlined_call_operand.vmem [shape: bf16[3,48,128], index: 1, kind: input, shape index: {}]
  %s2 = inlined_call_operand.vmem [shape: f32[1,128], index: 2, kind: input, shape index: {}]
  %s3 = inlined_call_operand.vmem [shape: f32[4,128,128], index: 3, kind: output, shape index: {}]
  %s4 = sld [smem:[#allocation0]]
  $region45: #{conv_adapt.1} parent=0
    _
  %s6 = ssub.s32 1, %s4
  %s7 = scalar_select 0, %s6, %s4
  loop: start=0, step=1, limit=6
  $region2: #{conv_adapt.1} parent=0 // loop_pre_header
    _
  $region3: #{conv_adapt.1} parent=0 // loop_header
    %s9 = sphi 0, %s13
    %p10 = scmp.ge.s32.totalorder %s9, 6
    %s19 = sphi 0, %s21
    %s22 = sphi 0, %s19
    %s23 = sphi 0, %s22
    %s39 = sphi 0, %s23
    %s43 = sphi 0, %s43
    %s45 = sphi 0, %s43
    %s46 = sphi 0, %s45
    %s60 = sphi 0, %s46
    %s64 = sphi 0, %s64
    %s66 = sphi 0, %s64
    %s67 = sphi 0, %s66
    %s81 = sphi 0, %s67
    %s87 = sphi 0, %s89
    %s90 = sphi 0, %s87
    %s91 = sphi 0, %s90
    %s107 = sphi 0, %s91
  $region4: #{conv_adapt.1} parent=0 // loop_header_branch
    %12 = sbr.rel (%p10) target = $region8
  $region5: #{conv_adapt.1} parent=0 // loop_body
    %s14 = ssub.s32 %s9, 1
    %s15 = ssub.s32 %s9, 2
    %s16 = sadd.s32 %s9, 1
    %s17 = ssub.s32 %s9, %s16
    %p18 = scmp.eq.s32.totalorder %s17, 0
    %s20 = sadd.s32 %s19, 1
    %s21 = scalar_select %p18, %s19, %s20
    %p24 = pneg %p18
    %p25 = scmp.eq.s32.totalorder %s9, 3
    %p26 = por %p24, %p25
    %p27 = scmp.ne.s32.totalorder %s19, %s22
    %p28 = scmp.eq.s32.totalorder %s9, 0
    %p29 = por %p27, %p28
    %p30 = scmp.ne.s32.totalorder %s19, %s22
    %p31 = scmp.eq.s32.totalorder %s14, 3
    %p32 = por %p30, %p31
    %p33 = scmp.ne.s32.totalorder %s22, %s23
    %p34 = scmp.eq.s32.totalorder %s14, 0
    %p35 = por %p33, %p34
    %p36 = scmp.ne.s32.totalorder %s22, %s23
    %p37 = scmp.eq.s32.totalorder %s15, 3
    %p38 = por %p36, %p37
    %p40 = scmp.ne.s32.totalorder %s23, %s39
    %p41 = scmp.eq.s32.totalorder %s15, 0
    %p42 = por %p40, %p41
    %s44 = sadd.s32 %s43, 1
    %p47 = scmp.eq.s32.totalorder %s9, 3
    %p48 = scmp.ne.s32.totalorder %s43, %s45
    %p49 = scmp.eq.s32.totalorder %s9, 0
    %p50 = por %p48, %p49
    %p51 = scmp.ne.s32.totalorder %s43, %s45
    %p52 = scmp.eq.s32.totalorder %s14, 3
    %p53 = por %p51, %p52
    %p54 = scmp.ne.s32.totalorder %s45, %s46
    %p55 = scmp.eq.s32.totalorder %s14, 0
    %p56 = por %p54, %p55
    %p57 = scmp.ne.s32.totalorder %s45, %s46
    %p58 = scmp.eq.s32.totalorder %s15, 3
    %p59 = por %p57, %p58
    %p61 = scmp.ne.s32.totalorder %s46, %s60
    %p62 = scmp.eq.s32.totalorder %s15, 0
    %p63 = por %p61, %p62
    %s65 = sadd.s32 %s64, 1
    %p68 = scmp.eq.s32.totalorder %s9, 3
    %p69 = scmp.ne.s32.totalorder %s64, %s66
    %p70 = scmp.eq.s32.totalorder %s9, 0
    %p71 = por %p69, %p70
    %p72 = scmp.ne.s32.totalorder %s64, %s66
    %p73 = scmp.eq.s32.totalorder %s14, 3
    %p74 = por %p72, %p73
    %p75 = scmp.ne.s32.totalorder %s66, %s67
    %p76 = scmp.eq.s32.totalorder %s14, 0
    %p77 = por %p75, %p76
    %p78 = scmp.ne.s32.totalorder %s66, %s67
    %p79 = scmp.eq.s32.totalorder %s15, 3
    %p80 = por %p78, %p79
    %p82 = scmp.ne.s32.totalorder %s67, %s81
    %p83 = scmp.eq.s32.totalorder %s15, 0
    %p84 = por %p82, %p83
    %s85 = ssub.s32 %s9, %s16
    %p86 = scmp.eq.s32.totalorder %s85, 0
    %s88 = sadd.s32 %s87, 1
    %s89 = scalar_select %p86, %s87, %s88
    %p92 = pneg %p86
    %p93 = scmp.eq.s32.totalorder %s9, 3
    %p94 = por %p92, %p93
    %p95 = scmp.ne.s32.totalorder %s87, %s90
    %p96 = scmp.eq.s32.totalorder %s9, 0
    %p97 = por %p95, %p96
    %p98 = scmp.ne.s32.totalorder %s87, %s90
    %p99 = scmp.eq.s32.totalorder %s14, 3
    %p100 = por %p98, %p99
    %p101 = scmp.ne.s32.totalorder %s90, %s91
    %p102 = scmp.eq.s32.totalorder %s14, 0
    %p103 = por %p101, %p102
    %p104 = scmp.ne.s32.totalorder %s90, %s91
    %p105 = scmp.eq.s32.totalorder %s15, 3
    %p106 = por %p104, %p105
    %p108 = scmp.ne.s32.totalorder %s91, %s107
    %p109 = scmp.eq.s32.totalorder %s15, 0
    %p110 = por %p108, %p109
    %p111 = scmp.le.s32.totalorder 1, %s9
    %p112 = scmp.lt.s32.totalorder %s9, 5
    %p113 = pnand %p111, %p112
    %p114 = pneg %p113
    // Predicated region
    $region9: #{conv_adapt.1} parent=5 // pred_check
      _
    $region10: #{conv_adapt.1} parent=5 // pred_check_branch
      %116 = sbr.rel (%p113) target = $region12
    $region11: #{conv_adapt.1} parent=5 // pred_region
      %s117 = ssub.s32 %s9, 1
      // Predicated region
      $region13: #{conv_adapt.1} parent=11 // pred_check
        %p118 = pneg %p56
      $region14: #{conv_adapt.1} parent=11 // pred_check_branch
        %120 = sbr.rel (%p118) target = $region16
      $region15: #{conv_adapt.1} parent=11 // pred_region
        _
      $region16: #{conv_adapt.1} parent=11 // pred_fallthru
        _
      // Predicated region
      $region17: #{conv_adapt.1} parent=11 // pred_check
        %p121 = pneg %p77
      $region18: #{conv_adapt.1} parent=11 // pred_check_branch
        %123 = sbr.rel (%p121) target = $region20
      $region19: #{conv_adapt.1} parent=11 // pred_region
        _
      $region20: #{conv_adapt.1} parent=11 // pred_fallthru
        _
    $region12: #{conv_adapt.1} parent=5 // pred_fallthru
      _
    %p124 = scmp.lt.s32.totalorder %s9, 4
    // Predicated region
    $region21: #{conv_adapt.1} parent=5 // pred_check
      %p125 = pneg %p124
    $region22: #{conv_adapt.1} parent=5 // pred_check_branch
      %127 = sbr.rel (%p125) target = $region24
    $region23: #{conv_adapt.1} parent=5 // pred_region
      // Predicated region
      $region25: #{conv_adapt.1} parent=23 // pred_check
        %p128 = pneg %p29
      $region26: #{conv_adapt.1} parent=23 // pred_check_branch
        %130 = sbr.rel (%p128) target = $region28
      $region27: #{conv_adapt.1} parent=23 // pred_region
        %p131 = scmp.lt.s32.totalorder %s9, 3
        %s132 = scalar_select %p131, %s9, 3
        %s133 = smul.addr %s132, 30
        %s134 = smul.addr %s133, 4
        %s135 = scalar_lea.vmem %s0, %s134
      $region28: #{conv_adapt.1} parent=23 // pred_fallthru
        _
    $region24: #{conv_adapt.1} parent=5 // pred_fallthru
      _
    %p136 = scmp.le.s32.totalorder 1, %s9
    %p137 = scmp.lt.s32.totalorder %s9, 5
    %p138 = pnand %p136, %p137
    %p139 = pneg %p138
    // Predicated region
    $region29: #{conv_adapt.1} parent=5 // pred_check
      _
    $region30: #{conv_adapt.1} parent=5 // pred_check_branch
      %141 = sbr.rel (%p138) target = $region32
    $region31: #{conv_adapt.1} parent=5 // pred_region
      %s142 = ssub.s32 %s9, 1
      %p143 = scmp.lt.s32.totalorder %s14, 3
      %s144 = scalar_select %p143, %s14, 3
      %s145 = smul.addr %s144, 30
      %s146 = smul.addr %s145, 4
      %s147 = scalar_lea.vmem %s0, %s146
      %p148 = pneg %p35
      %p149 = pneg %p32
      %p150 = pneg %p56
      %p151 = pneg %p53
      %p152 = pneg %p77
      %p153 = pneg %p74
      %p154 = pneg %p103
      %p155 = pneg %p100
      %p156 = scmp.lt.s32.totalorder %s14, 3
      %s157 = scalar_select %p156, %s14, 3
      %s158 = smul.addr %s157, 16
      %s159 = smul.addr %s158, 8
      %s160 = scalar_lea.vmem %s3, %s159
      %p161 = scmp.lt.s32.totalorder %s14, 3
      %s162 = scalar_select %p161, %s14, 3
      %s163 = smul.addr %s162, 30
      %s164 = smul.addr %s163, 4
      %s165 = scalar_lea.vmem %s0, %s164
      %p166 = scmp.lt.s32.totalorder %s14, 3
      %s167 = scalar_select %p166, %s14, 3
      %s168 = smul.addr %s167, 16
      %s169 = smul.addr %s168, 8
      %s170 = scalar_lea.vmem %s3, %s169
      %v172 = vld [vmem:[%s165] sm:$0xf]
      %v173 = vld [vmem:[%s165 + $0x4] sm:$0xf]
      %v174 = vld [vmem:[%s165 + $0xc] sm:$0xf]
      %v175 = vld [vmem:[%s165 + $0x10] sm:$0xf]
      %v176 = vld [vmem:[%s165 + $0x18] sm:$0xf]
      %v177 = vld [vmem:[%s165 + $0x1c] sm:$0xf]
      %v178 = vld [vmem:[%s165 + $0x24] sm:$0xf]
      %v179 = vld [vmem:[%s165 + $0x28] sm:$0xf]
      %v180 = vld [vmem:[%s165 + $0x30] sm:$0xf]
      %v181 = vld [vmem:[%s165 + $0x34] sm:$0xf]
      %v182 = vld [vmem:[%s165 + $0x3c] sm:$0xf]
      %v183 = vld [vmem:[%s165 + $0x40] sm:$0xf]
      %v184 = vld [vmem:[%s165 + $0x48] sm:$0xf]
      %v185 = vld [vmem:[%s165 + $0x4c] sm:$0xf]
      %v186 = vld [vmem:[%s165 + $0x54] sm:$0xf]
      %v187 = vld [vmem:[%s165 + $0x58] sm:$0xf]
      %vm188 = vcmask 125952
      %189 = vst.msk [vmem:[#allocation2] sm:$0xf] %vm188, %v172
      %190 = vst.msk [vmem:[#allocation2 + $0x4] sm:$0xf] %vm188, %v173
      %191 = vst.msk [vmem:[#allocation2 + $0x8] sm:$0xf] %vm188, %v174
      %192 = vst.msk [vmem:[#allocation2 + $0xc] sm:$0xf] %vm188, %v175
      %193 = vst.msk [vmem:[#allocation2 + $0x10] sm:$0xf] %vm188, %v176
      %194 = vst.msk [vmem:[#allocation2 + $0x14] sm:$0xf] %vm188, %v177
      %195 = vst.msk [vmem:[#allocation2 + $0x18] sm:$0xf] %vm188, %v178
      %196 = vst.msk [vmem:[#allocation2 + $0x1c] sm:$0xf] %vm188, %v179
      %197 = vst.msk [vmem:[#allocation2 + $0x20] sm:$0xf] %vm188, %v180
      %198 = vst.msk [vmem:[#allocation2 + $0x24] sm:$0xf] %vm188, %v181
      %199 = vst.msk [vmem:[#allocation2 + $0x28] sm:$0xf] %vm188, %v182
      %200 = vst.msk [vmem:[#allocation2 + $0x2c] sm:$0xf] %vm188, %v183
      %201 = vst.msk [vmem:[#allocation2 + $0x30] sm:$0xf] %vm188, %v184
      %202 = vst.msk [vmem:[#allocation2 + $0x34] sm:$0xf] %vm188, %v185
      %203 = vst.msk [vmem:[#allocation2 + $0x38] sm:$0xf] %vm188, %v186
      %204 = vst.msk [vmem:[#allocation2 + $0x3c] sm:$0xf] %vm188, %v187
      %v205 = vld [vmem:[%s165] sm:$0xf]
      %v206 = vld [vmem:[%s165 + $0x4] sm:$0xf]
      %v207 = vld [vmem:[%s165 + $0x8] sm:$0x1]
      %v208 = vld [vmem:[%s165 + $0xc] sm:$0xf]
      %v209 = vld [vmem:[%s165 + $0x10] sm:$0xf]
      %v210 = vld [vmem:[%s165 + $0x14] sm:$0x1]
      %v211 = vld [vmem:[%s165 + $0x18] sm:$0xf]
      %v212 = vld [vmem:[%s165 + $0x1c] sm:$0xf]
      %v213 = vld [vmem:[%s165 + $0x20] sm:$0x1]
      %v214 = vld [vmem:[%s165 + $0x24] sm:$0xf]
      %v215 = vld [vmem:[%s165 + $0x28] sm:$0xf]
      %v216 = vld [vmem:[%s165 + $0x2c] sm:$0x1]
      %v217 = vld [vmem:[%s165 + $0x30] sm:$0xf]
      %v218 = vld [vmem:[%s165 + $0x34] sm:$0xf]
      %v219 = vld [vmem:[%s165 + $0x38] sm:$0x1]
      %v220 = vld [vmem:[%s165 + $0x3c] sm:$0xf]
      %v221 = vld [vmem:[%s165 + $0x40] sm:$0xf]
      %v222 = vld [vmem:[%s165 + $0x44] sm:$0x1]
      %v223 = vld [vmem:[%s165 + $0x48] sm:$0xf]
      %v224 = vld [vmem:[%s165 + $0x4c] sm:$0xf]
      %v225 = vld [vmem:[%s165 + $0x50] sm:$0x1]
      %v226 = vld [vmem:[%s165 + $0x54] sm:$0xf]
      %v227 = vld [vmem:[%s165 + $0x58] sm:$0xf]
      %v228 = vld [vmem:[%s165 + $0x5c] sm:$0x1]
      %vm229 = vsmask.f32 3328
      %vm230 = vsmask.f32 7440
      %vm231 = vmor %vm229, %vm230
      %v233 = vshrl.u32 %v205, 16
      %v235 = vrot.slane %v233, 4
      %v236 = vshll.u32 %v205, 16
      %v238 = vrot.slane %v236, 5
      %v239 = vor.u32 %v235, %v238
      %v240 = vrot.slane %v239, 4
      %v242 = vshll.u32 %v206, 16
      %v244 = vrot.slane %v242, 5
      %v245 = vsel %vm231, %v240, %v244
      %v246 = vshrl.u32 %v206, 16
      %v248 = vrot.slane %v246, 4
      %v249 = vor.u32 %v248, %v244
      %v250 = vrot.slane %v249, 4
      %v252 = vshll.u32 %v207, 16
      %v254 = vrot.slane %v252, 5
      %v255 = vsel %vm231, %v250, %v254
      %v257 = vshrl.u32 %v208, 16
      %v259 = vrot.slane %v257, 4
      %v260 = vshll.u32 %v208, 16
      %v262 = vrot.slane %v260, 5
      %v263 = vor.u32 %v259, %v262
      %v264 = vrot.slane %v263, 4
      %v266 = vshll.u32 %v209, 16
      %v268 = vrot.slane %v266, 5
      %v269 = vsel %vm231, %v264, %v268
      %v270 = vshrl.u32 %v209, 16
      %v272 = vrot.slane %v270, 4
      %v273 = vor.u32 %v272, %v268
      %v274 = vrot.slane %v273, 4
      %v276 = vshll.u32 %v210, 16
      %v278 = vrot.slane %v276, 5
      %v279 = vsel %vm231, %v274, %v278
      %v281 = vshrl.u32 %v211, 16
      %v283 = vrot.slane %v281, 4
      %v284 = vshll.u32 %v211, 16
      %v286 = vrot.slane %v284, 5
      %v287 = vor.u32 %v283, %v286
      %v288 = vrot.slane %v287, 4
      %v290 = vshll.u32 %v212, 16
      %v292 = vrot.slane %v290, 5
      %v293 = vsel %vm231, %v288, %v292
      %v294 = vshrl.u32 %v212, 16
      %v296 = vrot.slane %v294, 4
      %v297 = vor.u32 %v296, %v292
      %v298 = vrot.slane %v297, 4
      %v300 = vshll.u32 %v213, 16
      %v302 = vrot.slane %v300, 5
      %v303 = vsel %vm231, %v298, %v302
      %v305 = vshrl.u32 %v214, 16
      %v307 = vrot.slane %v305, 4
      %v308 = vshll.u32 %v214, 16
      %v310 = vrot.slane %v308, 5
      %v311 = vor.u32 %v307, %v310
      %v312 = vrot.slane %v311, 4
      %v314 = vshll.u32 %v215, 16
      %v316 = vrot.slane %v314, 5
      %v317 = vsel %vm231, %v312, %v316
      %v318 = vshrl.u32 %v215, 16
      %v320 = vrot.slane %v318, 4
      %v321 = vor.u32 %v320, %v316
      %v322 = vrot.slane %v321, 4
      %v324 = vshll.u32 %v216, 16
      %v326 = vrot.slane %v324, 5
      %v327 = vsel %vm231, %v322, %v326
      %v329 = vshrl.u32 %v217, 16
      %v331 = vrot.slane %v329, 4
      %v332 = vshll.u32 %v217, 16
      %v334 = vrot.slane %v332, 5
      %v335 = vor.u32 %v331, %v334
      %v336 = vrot.slane %v335, 4
      %v338 = vshll.u32 %v218, 16
      %v340 = vrot.slane %v338, 5
      %v341 = vsel %vm231, %v336, %v340
      %v342 = vshrl.u32 %v218, 16
      %v344 = vrot.slane %v342, 4
      %v345 = vor.u32 %v344, %v340
      %v346 = vrot.slane %v345, 4
      %v348 = vshll.u32 %v219, 16
      %v350 = vrot.slane %v348, 5
      %v351 = vsel %vm231, %v346, %v350
      %v353 = vshrl.u32 %v220, 16
      %v355 = vrot.slane %v353, 4
      %v356 = vshll.u32 %v220, 16
      %v358 = vrot.slane %v356, 5
      %v359 = vor.u32 %v355, %v358
      %v360 = vrot.slane %v359, 4
      %v362 = vshll.u32 %v221, 16
      %v364 = vrot.slane %v362, 5
      %v365 = vsel %vm231, %v360, %v364
      %v366 = vshrl.u32 %v221, 16
      %v368 = vrot.slane %v366, 4
      %v369 = vor.u32 %v368, %v364
      %v370 = vrot.slane %v369, 4
      %v372 = vshll.u32 %v222, 16
      %v374 = vrot.slane %v372, 5
      %v375 = vsel %vm231, %v370, %v374
      %v377 = vshrl.u32 %v223, 16
      %v379 = vrot.slane %v377, 4
      %v380 = vshll.u32 %v223, 16
      %v382 = vrot.slane %v380, 5
      %v383 = vor.u32 %v379, %v382
      %v384 = vrot.slane %v383, 4
      %v386 = vshll.u32 %v224, 16
      %v388 = vrot.slane %v386, 5
      %v389 = vsel %vm231, %v384, %v388
      %v390 = vshrl.u32 %v224, 16
      %v392 = vrot.slane %v390, 4
      %v393 = vor.u32 %v392, %v388
      %v394 = vrot.slane %v393, 4
      %v396 = vshll.u32 %v225, 16
      %v398 = vrot.slane %v396, 5
      %v399 = vsel %vm231, %v394, %v398
      %v401 = vshrl.u32 %v226, 16
      %v403 = vrot.slane %v401, 4
      %v404 = vshll.u32 %v226, 16
      %v406 = vrot.slane %v404, 5
      %v407 = vor.u32 %v403, %v406
      %v408 = vrot.slane %v407, 4
      %v410 = vshll.u32 %v227, 16
      %v412 = vrot.slane %v410, 5
      %v413 = vsel %vm231, %v408, %v412
      %v414 = vshrl.u32 %v227, 16
      %v416 = vrot.slane %v414, 4
      %v417 = vor.u32 %v416, %v412
      %v418 = vrot.slane %v417, 4
      %v420 = vshll.u32 %v228, 16
      %v422 = vrot.slane %v420, 5
      %v423 = vsel %vm231, %v418, %v422
      %424 = vrot.lane.b32.xlu0 %v245, 16
      %v425 = vpop.permute.xlu0 %424
      %426 = vrot.lane.b32.xlu0 %v255, 16
      %v427 = vpop.permute.xlu0 %426
      %428 = vrot.lane.b32.xlu0 %v269, 16
      %v429 = vpop.permute.xlu0 %428
      %430 = vrot.lane.b32.xlu0 %v279, 16
      %v431 = vpop.permute.xlu0 %430
      %432 = vrot.lane.b32.xlu0 %v293, 16
      %v433 = vpop.permute.xlu0 %432
      %434 = vrot.lane.b32.xlu0 %v303, 16
      %v435 = vpop.permute.xlu0 %434
      %436 = vrot.lane.b32.xlu0 %v317, 16
      %v437 = vpop.permute.xlu0 %436
      %438 = vrot.lane.b32.xlu0 %v327, 16
      %v439 = vpop.permute.xlu0 %438
      %440 = vrot.lane.b32.xlu0 %v341, 16
      %v441 = vpop.permute.xlu0 %440
      %442 = vrot.lane.b32.xlu0 %v351, 16
      %v443 = vpop.permute.xlu0 %442
      %444 = vrot.lane.b32.xlu0 %v365, 16
      %v445 = vpop.permute.xlu0 %444
      %446 = vrot.lane.b32.xlu0 %v375, 16
      %v447 = vpop.permute.xlu0 %446
      %448 = vrot.lane.b32.xlu0 %v389, 16
      %v449 = vpop.permute.xlu0 %448
      %450 = vrot.lane.b32.xlu0 %v399, 16
      %v451 = vpop.permute.xlu0 %450
      %452 = vrot.lane.b32.xlu0 %v413, 16
      %v453 = vpop.permute.xlu0 %452
      %454 = vrot.lane.b32.xlu0 %v423, 16
      %v455 = vpop.permute.xlu0 %454
      %vm472 = vcmask 257152
      %473 = vst.msk [vmem:[#allocation2] sm:$0xf] %vm472, %v425
      %474 = vst.msk [vmem:[#allocation2 + $0x4] sm:$0xf] %vm472, %v427
      %475 = vst.msk [vmem:[#allocation2 + $0x8] sm:$0xf] %vm472, %v429
      %476 = vst.msk [vmem:[#allocation2 + $0xc] sm:$0xf] %vm472, %v431
      %477 = vst.msk [vmem:[#allocation2 + $0x10] sm:$0xf] %vm472, %v433
      %478 = vst.msk [vmem:[#allocation2 + $0x14] sm:$0xf] %vm472, %v435
      %479 = vst.msk [vmem:[#allocation2 + $0x18] sm:$0xf] %vm472, %v437
      %480 = vst.msk [vmem:[#allocation2 + $0x1c] sm:$0xf] %vm472, %v439
      %481 = vst.msk [vmem:[#allocation2 + $0x20] sm:$0xf] %vm472, %v441
      %482 = vst.msk [vmem:[#allocation2 + $0x24] sm:$0xf] %vm472, %v443
      %483 = vst.msk [vmem:[#allocation2 + $0x28] sm:$0xf] %vm472, %v445
      %484 = vst.msk [vmem:[#allocation2 + $0x2c] sm:$0xf] %vm472, %v447
      %485 = vst.msk [vmem:[#allocation2 + $0x30] sm:$0xf] %vm472, %v449
      %486 = vst.msk [vmem:[#allocation2 + $0x34] sm:$0xf] %vm472, %v451
      %487 = vst.msk [vmem:[#allocation2 + $0x38] sm:$0xf] %vm472, %v453
      %488 = vst.msk [vmem:[#allocation2 + $0x3c] sm:$0xf] %vm472, %v455
      %v489 = vld [vmem:[%s165] sm:$0xe]
      %v490 = vld [vmem:[%s165 + $0x4] sm:$0xf]
      %v491 = vld [vmem:[%s165 + $0x8] sm:$0x1]
      %v492 = vld [vmem:[%s165 + $0xc] sm:$0xe]
      %v493 = vld [vmem:[%s165 + $0x10] sm:$0xf]
      %v494 = vld [vmem:[%s165 + $0x14] sm:$0x1]
      %v495 = vld [vmem:[%s165 + $0x18] sm:$0xe]
      %v496 = vld [vmem:[%s165 + $0x1c] sm:$0xf]
      %v497 = vld [vmem:[%s165 + $0x20] sm:$0x1]
      %v498 = vld [vmem:[%s165 + $0x24] sm:$0xe]
      %v499 = vld [vmem:[%s165 + $0x28] sm:$0xf]
      %v500 = vld [vmem:[%s165 + $0x2c] sm:$0x1]
      %v501 = vld [vmem:[%s165 + $0x30] sm:$0xe]
      %v502 = vld [vmem:[%s165 + $0x34] sm:$0xf]
      %v503 = vld [vmem:[%s165 + $0x38] sm:$0x1]
      %v504 = vld [vmem:[%s165 + $0x3c] sm:$0xe]
      %v505 = vld [vmem:[%s165 + $0x40] sm:$0xf]
      %v506 = vld [vmem:[%s165 + $0x44] sm:$0x1]
      %v507 = vld [vmem:[%s165 + $0x48] sm:$0xe]
      %v508 = vld [vmem:[%s165 + $0x4c] sm:$0xf]
      %v509 = vld [vmem:[%s165 + $0x50] sm:$0x1]
      %v510 = vld [vmem:[%s165 + $0x54] sm:$0xe]
      %v511 = vld [vmem:[%s165 + $0x58] sm:$0xf]
      %v512 = vld [vmem:[%s165 + $0x5c] sm:$0x1]
      %vm537 = vcmask 1042432
      %vm538 = vcmask 1046532
      %vm539 = vmor %vm537, %vm538
      %v540 = vrot.slane %v489, 5
      %v541 = vrot.slane %v540, 4
      %v542 = vrot.slane %v490, 5
      %v543 = vsel %vm539, %v541, %v542
      %v544 = vrot.slane %v542, 4
      %v545 = vrot.slane %v491, 5
      %v546 = vsel %vm539, %v544, %v545
      %v547 = vrot.slane %v492, 5
      %v548 = vrot.slane %v547, 4
      %v549 = vrot.slane %v493, 5
      %v550 = vsel %vm539, %v548, %v549
      %v551 = vrot.slane %v549, 4
      %v552 = vrot.slane %v494, 5
      %v553 = vsel %vm539, %v551, %v552
      %v554 = vrot.slane %v495, 5
      %v555 = vrot.slane %v554, 4
      %v556 = vrot.slane %v496, 5
      %v557 = vsel %vm539, %v555, %v556
      %v558 = vrot.slane %v556, 4
      %v559 = vrot.slane %v497, 5
      %v560 = vsel %vm539, %v558, %v559
      %v561 = vrot.slane %v498, 5
      %v562 = vrot.slane %v561, 4
      %v563 = vrot.slane %v499, 5
      %v564 = vsel %vm539, %v562, %v563
      %v565 = vrot.slane %v563, 4
      %v566 = vrot.slane %v500, 5
      %v567 = vsel %vm539, %v565, %v566
      %v568 = vrot.slane %v501, 5
      %v569 = vrot.slane %v568, 4
      %v570 = vrot.slane %v502, 5
      %v571 = vsel %vm539, %v569, %v570
      %v572 = vrot.slane %v570, 4
      %v573 = vrot.slane %v503, 5
      %v574 = vsel %vm539, %v572, %v573
      %v575 = vrot.slane %v504, 5
      %v576 = vrot.slane %v575, 4
      %v577 = vrot.slane %v505, 5
      %v578 = vsel %vm539, %v576, %v577
      %v579 = vrot.slane %v577, 4
      %v580 = vrot.slane %v506, 5
      %v581 = vsel %vm539, %v579, %v580
      %v582 = vrot.slane %v507, 5
      %v583 = vrot.slane %v582, 4
      %v584 = vrot.slane %v508, 5
      %v585 = vsel %vm539, %v583, %v584
      %v586 = vrot.slane %v584, 4
      %v587 = vrot.slane %v509, 5
      %v588 = vsel %vm539, %v586, %v587
      %v589 = vrot.slane %v510, 5
      %v590 = vrot.slane %v589, 4
      %v591 = vrot.slane %v511, 5
      %v592 = vsel %vm539, %v590, %v591
      %v593 = vrot.slane %v591, 4
      %v594 = vrot.slane %v512, 5
      %v595 = vsel %vm539, %v593, %v594
      %596 = vrot.lane.b32.xlu0 %v543, 32
      %v597 = vpop.permute.xlu0 %596
      %598 = vrot.lane.b32.xlu0 %v546, 32
      %v599 = vpop.permute.xlu0 %598
      %600 = vrot.lane.b32.xlu0 %v550, 32
      %v601 = vpop.permute.xlu0 %600
      %602 = vrot.lane.b32.xlu0 %v553, 32
      %v603 = vpop.permute.xlu0 %602
      %604 = vrot.lane.b32.xlu0 %v557, 32
      %v605 = vpop.permute.xlu0 %604
      %606 = vrot.lane.b32.xlu0 %v560, 32
      %v607 = vpop.permute.xlu0 %606
      %608 = vrot.lane.b32.xlu0 %v564, 32
      %v609 = vpop.permute.xlu0 %608
      %610 = vrot.lane.b32.xlu0 %v567, 32
      %v611 = vpop.permute.xlu0 %610
      %612 = vrot.lane.b32.xlu0 %v571, 32
      %v613 = vpop.permute.xlu0 %612
      %614 = vrot.lane.b32.xlu0 %v574, 32
      %v615 = vpop.permute.xlu0 %614
      %616 = vrot.lane.b32.xlu0 %v578, 32
      %v617 = vpop.permute.xlu0 %616
      %618 = vrot.lane.b32.xlu0 %v581, 32
      %v619 = vpop.permute.xlu0 %618
      %620 = vrot.lane.b32.xlu0 %v585, 32
      %v621 = vpop.permute.xlu0 %620
      %622 = vrot.lane.b32.xlu0 %v588, 32
      %v623 = vpop.permute.xlu0 %622
      %624 = vrot.lane.b32.xlu0 %v592, 32
      %v625 = vpop.permute.xlu0 %624
      %626 = vrot.lane.b32.xlu0 %v595, 32
      %v627 = vpop.permute.xlu0 %626
      %vm644 = vcmask 388352
      %645 = vst.msk [vmem:[#allocation2] sm:$0xf] %vm644, %v597
      %646 = vst.msk [vmem:[#allocation2 + $0x4] sm:$0xf] %vm644, %v599
      %647 = vst.msk [vmem:[#allocation2 + $0x8] sm:$0xf] %vm644, %v601
      %648 = vst.msk [vmem:[#allocation2 + $0xc] sm:$0xf] %vm644, %v603
      %649 = vst.msk [vmem:[#allocation2 + $0x10] sm:$0xf] %vm644, %v605
      %650 = vst.msk [vmem:[#allocation2 + $0x14] sm:$0xf] %vm644, %v607
      %651 = vst.msk [vmem:[#allocation2 + $0x18] sm:$0xf] %vm644, %v609
      %652 = vst.msk [vmem:[#allocation2 + $0x1c] sm:$0xf] %vm644, %v611
      %653 = vst.msk [vmem:[#allocation2 + $0x20] sm:$0xf] %vm644, %v613
      %654 = vst.msk [vmem:[#allocation2 + $0x24] sm:$0xf] %vm644, %v615
      %655 = vst.msk [vmem:[#allocation2 + $0x28] sm:$0xf] %vm644, %v617
      %656 = vst.msk [vmem:[#allocation2 + $0x2c] sm:$0xf] %vm644, %v619
      %657 = vst.msk [vmem:[#allocation2 + $0x30] sm:$0xf] %vm644, %v621
      %658 = vst.msk [vmem:[#allocation2 + $0x34] sm:$0xf] %vm644, %v623
      %659 = vst.msk [vmem:[#allocation2 + $0x38] sm:$0xf] %vm644, %v625
      %660 = vst.msk [vmem:[#allocation2 + $0x3c] sm:$0xf] %vm644, %v627
      %v661 = vld [vmem:[#allocation2] sm:$0xf]
      %v662 = vld [vmem:[#allocation2 + $0x4] sm:$0xf]
      %v663 = vld [vmem:[#allocation2 + $0x8] sm:$0xf]
      %v664 = vld [vmem:[#allocation2 + $0xc] sm:$0xf]
      %v665 = vld [vmem:[#allocation2 + $0x10] sm:$0xf]
      %v666 = vld [vmem:[#allocation2 + $0x14] sm:$0xf]
      %v667 = vld [vmem:[#allocation2 + $0x18] sm:$0xf]
      %v668 = vld [vmem:[#allocation2 + $0x1c] sm:$0xf]
      %v669 = vld [vmem:[#allocation2 + $0x20] sm:$0xf]
      %v670 = vld [vmem:[#allocation2 + $0x24] sm:$0xf]
      %v671 = vld [vmem:[#allocation2 + $0x28] sm:$0xf]
      %v672 = vld [vmem:[#allocation2 + $0x2c] sm:$0xf]
      %v673 = vld [vmem:[#allocation2 + $0x30] sm:$0xf]
      %v674 = vld [vmem:[#allocation2 + $0x34] sm:$0xf]
      %v675 = vld [vmem:[#allocation2 + $0x38] sm:$0xf]
      %v676 = vld [vmem:[#allocation2 + $0x3c] sm:$0xf]
      %v677 = vld [vmem:[%s1] sm:$0xf]
      %v678 = vld [vmem:[%s1 + $0x4] sm:$0xf]
      %v679 = vld [vmem:[%s1 + $0x8] sm:$0xf]
      %v680 = vld [vmem:[%s1 + $0xc] sm:$0xf]
      %v681 = vld [vmem:[%s1 + $0x10] sm:$0xf]
      %v682 = vld [vmem:[%s1 + $0x14] sm:$0xf]
      %v699 = vunpack.c.l.b16 %v661
      %v700 = vunpack.c.l.b16 %v662
      %v701 = vunpack.c.l.b16 %v663
      %v702 = vunpack.c.l.b16 %v664
      %v703 = vunpack.c.l.b16 %v665
      %v704 = vunpack.c.l.b16 %v666
      %v705 = vunpack.c.l.b16 %v667
      %v706 = vunpack.c.l.b16 %v668
      %v707 = vunpack.c.l.b16 %v669
      %v708 = vunpack.c.l.b16 %v670
      %v709 = vunpack.c.l.b16 %v671
      %v710 = vunpack.c.l.b16 %v672
      %v711 = vunpack.c.l.b16 %v673
      %v712 = vunpack.c.l.b16 %v674
      %v713 = vunpack.c.l.b16 %v675
      %v714 = vunpack.c.l.b16 %v676
      %v715 = vpack.c.b16 %v700, %v699
      %v716 = vpack.c.b16 %v702, %v701
      %v717 = vpack.c.b16 %v704, %v703
      %v718 = vpack.c.b16 %v706, %v705
      %v719 = vpack.c.b16 %v708, %v707
      %v720 = vpack.c.b16 %v710, %v709
      %v721 = vpack.c.b16 %v712, %v711
      %v722 = vpack.c.b16 %v714, %v713
      %v729 = vunpack.c.l.b16 %v677
      %v730 = vunpack.c.l.b16 %v678
      %v731 = vunpack.c.l.b16 %v679
      %v732 = vunpack.c.l.b16 %v680
      %v733 = vunpack.c.l.b16 %v681
      %v734 = vunpack.c.l.b16 %v682
      %v735 = vpack.c.b16 %v730, %v729
      %v736 = vpack.c.b16 %v732, %v731
      %v737 = vpack.c.b16 %v734, %v733
      %vm741 = vcmask 392192
      %v743 = vsel %vm741, %v715, 0
      %v746 = vsel %vm741, %v716, 0
      %v749 = vsel %vm741, %v717, 0
      %v752 = vsel %vm741, %v718, 0
      %v755 = vsel %vm741, %v719, 0
      %v758 = vsel %vm741, %v720, 0
      %v761 = vsel %vm741, %v721, 0
      %v764 = vsel %vm741, %v722, 0
      %766 = vmatprep.subr.bf16.mxu0 0
      %767 = vmatpush1.bf16.msra.mxu0 0
      %768 = vmatprep.subr.bf16.mxu0 0
      %769 = vmatpush1.bf16.msra.mxu0 0
      %770 = vmatprep.subr.bf16.mxu0 0
      %771 = vmatpush1.bf16.msra.mxu0 0
      %772 = vmatprep.subr.bf16.mxu0 0
      %773 = vmatpush1.bf16.msra.mxu0 0
      %774 = vmatprep.subr.bf16.mxu0 0
      %775 = vmatpush1.bf16.msra.mxu0 0
      %776 = vmatprep.subr.bf16.mxu0 0
      %777 = vmatpush1.bf16.msra.mxu0 %v737
      %778 = vmatprep.subr.bf16.mxu0 0
      %779 = vmatpush1.bf16.msra.mxu0 %v736
      %780 = vmatprep.subr.bf16.mxu0 0
      %781 = vmatpush1.bf16.msra.mxu0 %v735
      %782 = vmatprep.subr.bf16.mxu0 0
      %783 = vmatpush2.bf16.msra.mxu0 0
      %784 = vmatprep.subr.bf16.mxu0 0
      %785 = vmatpush2.bf16.msra.mxu0 0
      %786 = vmatprep.subr.bf16.mxu0 0
      %787 = vmatpush2.bf16.msra.mxu0 0
      %788 = vmatprep.subr.bf16.mxu0 0
      %789 = vmatpush2.bf16.msra.mxu0 0
      %790 = vmatprep.subr.bf16.mxu0 0
      %791 = vmatpush2.bf16.msra.mxu0 0
      %792 = vmatprep.subr.bf16.mxu0 0
      %793 = vmatpush2.bf16.msra.mxu0 0
      %794 = vmatprep.subr.bf16.mxu0 0
      %795 = vmatpush2.bf16.msra.mxu0 0
      %796 = vmatprep.subr.bf16.mxu0 0
      %797 = vmatpush2.bf16.msra.mxu0 0
      %798 = vmatprep.mubr.bf16.mxu0 0
      %799 = vmatmul.mubr.bf16.gmra.mxu0 %v743
      %v800 = vpop.f32.mrf.mxu0
      %v801 = vadd.f32 0.0, %v800
      %v802 = vpop.f32.mrf.mxu0
      %v803 = vpop.f32.mrf.mxu0
      %v804 = vadd.f32 0.0, %v803
      %v805 = vpop.f32.mrf.mxu0
      %806 = vmatprep.mubr.bf16.mxu0 0
      %807 = vmatmul.mubr.bf16.gmra.mxu0 %v746
      %v808 = vpop.f32.mrf.mxu0
      %v809 = vadd.f32 0.0, %v808
      %v810 = vpop.f32.mrf.mxu0
      %v811 = vpop.f32.mrf.mxu0
      %v812 = vadd.f32 0.0, %v811
      %v813 = vpop.f32.mrf.mxu0
      %814 = vmatprep.mubr.bf16.mxu0 0
      %815 = vmatmul.mubr.bf16.gmra.mxu0 %v749
      %v816 = vpop.f32.mrf.mxu0
      %v817 = vadd.f32 0.0, %v816
      %v818 = vpop.f32.mrf.mxu0
      %v819 = vpop.f32.mrf.mxu0
      %v820 = vadd.f32 0.0, %v819
      %v821 = vpop.f32.mrf.mxu0
      %822 = vmatprep.mubr.bf16.mxu0 0
      %823 = vmatmul.mubr.bf16.gmra.mxu0 %v752
      %v824 = vpop.f32.mrf.mxu0
      %v825 = vadd.f32 0.0, %v824
      %v826 = vpop.f32.mrf.mxu0
      %v827 = vpop.f32.mrf.mxu0
      %v828 = vadd.f32 0.0, %v827
      %v829 = vpop.f32.mrf.mxu0
      %830 = vmatprep.mubr.bf16.mxu0 0
      %831 = vmatmul.mubr.bf16.gmra.mxu0 %v755
      %v832 = vpop.f32.mrf.mxu0
      %v833 = vadd.f32 0.0, %v832
      %v834 = vpop.f32.mrf.mxu0
      %v835 = vpop.f32.mrf.mxu0
      %v836 = vadd.f32 0.0, %v835
      %v837 = vpop.f32.mrf.mxu0
      %838 = vmatprep.mubr.bf16.mxu0 0
      %839 = vmatmul.mubr.bf16.gmra.mxu0 %v758
      %v840 = vpop.f32.mrf.mxu0
      %v841 = vadd.f32 0.0, %v840
      %v842 = vpop.f32.mrf.mxu0
      %v843 = vpop.f32.mrf.mxu0
      %v844 = vadd.f32 0.0, %v843
      %v845 = vpop.f32.mrf.mxu0
      %846 = vmatprep.mubr.bf16.mxu0 0
      %847 = vmatmul.mubr.bf16.gmra.mxu0 %v761
      %v848 = vpop.f32.mrf.mxu0
      %v849 = vadd.f32 0.0, %v848
      %v850 = vpop.f32.mrf.mxu0
      %v851 = vpop.f32.mrf.mxu0
      %v852 = vadd.f32 0.0, %v851
      %v853 = vpop.f32.mrf.mxu0
      %854 = vmatprep.mubr.bf16.mxu0 0
      %855 = vmatmul.mubr.bf16.gmra.mxu0 %v764
      %v856 = vpop.f32.mrf.mxu0
      %v857 = vadd.f32 0.0, %v856
      %v858 = vpop.f32.mrf.mxu0
      %v859 = vpop.f32.mrf.mxu0
      %v860 = vadd.f32 0.0, %v859
      %v861 = vpop.f32.mrf.mxu0
      %862 = vdwg.mxu0
      %863 = vst [vmem:[#allocation3] sm:$0xff] %v801
      %864 = vst [vmem:[#allocation3 + $0x8] sm:$0xff] %v804
      %865 = vst [vmem:[#allocation3 + $0x10] sm:$0xff] %v809
      %866 = vst [vmem:[#allocation3 + $0x18] sm:$0xff] %v812
      %867 = vst [vmem:[#allocation3 + $0x20] sm:$0xff] %v817
      %868 = vst [vmem:[#allocation3 + $0x28] sm:$0xff] %v820
      %869 = vst [vmem:[#allocation3 + $0x30] sm:$0xff] %v825
      %870 = vst [vmem:[#allocation3 + $0x38] sm:$0xff] %v828
      %871 = vst [vmem:[#allocation3 + $0x40] sm:$0xff] %v833
      %872 = vst [vmem:[#allocation3 + $0x48] sm:$0xff] %v836
      %873 = vst [vmem:[#allocation3 + $0x50] sm:$0xff] %v841
      %874 = vst [vmem:[#allocation3 + $0x58] sm:$0xff] %v844
      %875 = vst [vmem:[#allocation3 + $0x60] sm:$0xff] %v849
      %876 = vst [vmem:[#allocation3 + $0x68] sm:$0xff] %v852
      %877 = vst [vmem:[#allocation3 + $0x70] sm:$0xff] %v857
      %878 = vst [vmem:[#allocation3 + $0x78] sm:$0xff] %v860
      %s879 = scalar_lea.vmem %s165, 12
      %v880 = vld [vmem:[%s879] sm:$0xf]
      %v881 = vld [vmem:[%s879 + $0x4] sm:$0xf]
      %v882 = vld [vmem:[%s879 + $0xc] sm:$0xf]
      %v883 = vld [vmem:[%s879 + $0x10] sm:$0xf]
      %v884 = vld [vmem:[%s879 + $0x18] sm:$0xf]
      %v885 = vld [vmem:[%s879 + $0x1c] sm:$0xf]
      %v886 = vld [vmem:[%s879 + $0x24] sm:$0xf]
      %v887 = vld [vmem:[%s879 + $0x28] sm:$0xf]
      %v888 = vld [vmem:[%s879 + $0x30] sm:$0xf]
      %v889 = vld [vmem:[%s879 + $0x34] sm:$0xf]
      %v890 = vld [vmem:[%s879 + $0x3c] sm:$0xf]
      %v891 = vld [vmem:[%s879 + $0x40] sm:$0xf]
      %v892 = vld [vmem:[%s879 + $0x48] sm:$0xf]
      %v893 = vld [vmem:[%s879 + $0x4c] sm:$0xf]
      %v894 = vld [vmem:[%s879 + $0x54] sm:$0xf]
      %v895 = vld [vmem:[%s879 + $0x58] sm:$0xf]
      %896 = vst.msk [vmem:[#allocation2] sm:$0xf] %vm188, %v880
      %897 = vst.msk [vmem:[#allocation2 + $0x4] sm:$0xf] %vm188, %v881
      %898 = vst.msk [vmem:[#allocation2 + $0x8] sm:$0xf] %vm188, %v882
      %899 = vst.msk [vmem:[#allocation2 + $0xc] sm:$0xf] %vm188, %v883
      %900 = vst.msk [vmem:[#allocation2 + $0x10] sm:$0xf] %vm188, %v884
      %901 = vst.msk [vmem:[#allocation2 + $0x14] sm:$0xf] %vm188, %v885
      %902 = vst.msk [vmem:[#allocation2 + $0x18] sm:$0xf] %vm188, %v886
      %903 = vst.msk [vmem:[#allocation2 + $0x1c] sm:$0xf] %vm188, %v887
      %904 = vst.msk [vmem:[#allocation2 + $0x20] sm:$0xf] %vm188, %v888
      %905 = vst.msk [vmem:[#allocation2 + $0x24] sm:$0xf] %vm188, %v889
      %906 = vst.msk [vmem:[#allocation2 + $0x28] sm:$0xf] %vm188, %v890
      %907 = vst.msk [vmem:[#allocation2 + $0x2c] sm:$0xf] %vm188, %v891
      %908 = vst.msk [vmem:[#allocation2 + $0x30] sm:$0xf] %vm188, %v892
      %909 = vst.msk [vmem:[#allocation2 + $0x34] sm:$0xf] %vm188, %v893
      %910 = vst.msk [vmem:[#allocation2 + $0x38] sm:$0xf] %vm188, %v894
      %911 = vst.msk [vmem:[#allocation2 + $0x3c] sm:$0xf] %vm188, %v895
      %v912 = vld [vmem:[%s879] sm:$0xf]
      %v913 = vld [vmem:[%s879 + $0x4] sm:$0xf]
      %v914 = vld [vmem:[%s879 + $0x8] sm:$0x1]
      %v915 = vld [vmem:[%s879 + $0xc] sm:$0xf]
      %v916 = vld [vmem:[%s879 + $0x10] sm:$0xf]
      %v917 = vld [vmem:[%s879 + $0x14] sm:$0x1]
      %v918 = vld [vmem:[%s879 + $0x18] sm:$0xf]
      %v919 = vld [vmem:[%s879 + $0x1c] sm:$0xf]
      %v920 = vld [vmem:[%s879 + $0x20] sm:$0x1]
      %v921 = vld [vmem:[%s879 + $0x24] sm:$0xf]
      %v922 = vld [vmem:[%s879 + $0x28] sm:$0xf]
      %v923 = vld [vmem:[%s879 + $0x2c] sm:$0x1]
      %v924 = vld [vmem:[%s879 + $0x30] sm:$0xf]
      %v925 = vld [vmem:[%s879 + $0x34] sm:$0xf]
      %v926 = vld [vmem:[%s879 + $0x38] sm:$0x1]
      %v927 = vld [vmem:[%s879 + $0x3c] sm:$0xf]
      %v928 = vld [vmem:[%s879 + $0x40] sm:$0xf]
      %v929 = vld [vmem:[%s879 + $0x44] sm:$0x1]
      %v930 = vld [vmem:[%s879 + $0x48] sm:$0xf]
      %v931 = vld [vmem:[%s879 + $0x4c] sm:$0xf]
      %v932 = vld [vmem:[%s879 + $0x50] sm:$0x1]
      %v933 = vld [vmem:[%s879 + $0x54] sm:$0xf]
      %v934 = vld [vmem:[%s879 + $0x58] sm:$0xf]
      %v935 = vld [vmem:[%s879 + $0x5c] sm:$0x1]
      %v937 = vshrl.u32 %v912, 16
      %v939 = vrot.slane %v937, 4
      %v940 = vshll.u32 %v912, 16
      %v942 = vrot.slane %v940, 5
      %v943 = vor.u32 %v939, %v942
      %v944 = vrot.slane %v943, 4
      %v946 = vshll.u32 %v913, 16
      %v948 = vrot.slane %v946, 5
      %v949 = vsel %vm231, %v944, %v948
      %v950 = vshrl.u32 %v913, 16
      %v952 = vrot.slane %v950, 4
      %v953 = vor.u32 %v952, %v948
      %v954 = vrot.slane %v953, 4
      %v956 = vshll.u32 %v914, 16
      %v958 = vrot.slane %v956, 5
      %v959 = vsel %vm231, %v954, %v958
      %v961 = vshrl.u32 %v915, 16
      %v963 = vrot.slane %v961, 4
      %v964 = vshll.u32 %v915, 16
      %v966 = vrot.slane %v964, 5
      %v967 = vor.u32 %v963, %v966
      %v968 = vrot.slane %v967, 4
      %v970 = vshll.u32 %v916, 16
      %v972 = vrot.slane %v970, 5
      %v973 = vsel %vm231, %v968, %v972
      %v974 = vshrl.u32 %v916, 16
      %v976 = vrot.slane %v974, 4
      %v977 = vor.u32 %v976, %v972
      %v978 = vrot.slane %v977, 4
      %v980 = vshll.u32 %v917, 16
      %v982 = vrot.slane %v980, 5
      %v983 = vsel %vm231, %v978, %v982
      %v985 = vshrl.u32 %v918, 16
      %v987 = vrot.slane %v985, 4
      %v988 = vshll.u32 %v918, 16
      %v990 = vrot.slane %v988, 5
      %v991 = vor.u32 %v987, %v990
      %v992 = vrot.slane %v991, 4
      %v994 = vshll.u32 %v919, 16
      %v996 = vrot.slane %v994, 5
      %v997 = vsel %vm231, %v992, %v996
      %v998 = vshrl.u32 %v919, 16
      %v1000 = vrot.slane %v998, 4
      %v1001 = vor.u32 %v1000, %v996
      %v1002 = vrot.slane %v1001, 4
      %v1004 = vshll.u32 %v920, 16
      %v1006 = vrot.slane %v1004, 5
      %v1007 = vsel %vm231, %v1002, %v1006
      %v1009 = vshrl.u32 %v921, 16
      %v1011 = vrot.slane %v1009, 4
      %v1012 = vshll.u32 %v921, 16
      %v1014 = vrot.slane %v1012, 5
      %v1015 = vor.u32 %v1011, %v1014
      %v1016 = vrot.slane %v1015, 4
      %v1018 = vshll.u32 %v922, 16
      %v1020 = vrot.slane %v1018, 5
      %v1021 = vsel %vm231, %v1016, %v1020
      %v1022 = vshrl.u32 %v922, 16
      %v1024 = vrot.slane %v1022, 4
      %v1025 = vor.u32 %v1024, %v1020
      %v1026 = vrot.slane %v1025, 4
      %v1028 = vshll.u32 %v923, 16
      %v1030 = vrot.slane %v1028, 5
      %v1031 = vsel %vm231, %v1026, %v1030
      %v1033 = vshrl.u32 %v924, 16
      %v1035 = vrot.slane %v1033, 4
      %v1036 = vshll.u32 %v924, 16
      %v1038 = vrot.slane %v1036, 5
      %v1039 = vor.u32 %v1035, %v1038
      %v1040 = vrot.slane %v1039, 4
      %v1042 = vshll.u32 %v925, 16
      %v1044 = vrot.slane %v1042, 5
      %v1045 = vsel %vm231, %v1040, %v1044
      %v1046 = vshrl.u32 %v925, 16
      %v1048 = vrot.slane %v1046, 4
      %v1049 = vor.u32 %v1048, %v1044
      %v1050 = vrot.slane %v1049, 4
      %v1052 = vshll.u32 %v926, 16
      %v1054 = vrot.slane %v1052, 5
      %v1055 = vsel %vm231, %v1050, %v1054
      %v1057 = vshrl.u32 %v927, 16
      %v1059 = vrot.slane %v1057, 4
      %v1060 = vshll.u32 %v927, 16
      %v1062 = vrot.slane %v1060, 5
      %v1063 = vor.u32 %v1059, %v1062
      %v1064 = vrot.slane %v1063, 4
      %v1066 = vshll.u32 %v928, 16
      %v1068 = vrot.slane %v1066, 5
      %v1069 = vsel %vm231, %v1064, %v1068
      %v1070 = vshrl.u32 %v928, 16
      %v1072 = vrot.slane %v1070, 4
      %v1073 = vor.u32 %v1072, %v1068
      %v1074 = vrot.slane %v1073, 4
      %v1076 = vshll.u32 %v929, 16
      %v1078 = vrot.slane %v1076, 5
      %v1079 = vsel %vm231, %v1074, %v1078
      %v1081 = vshrl.u32 %v930, 16
      %v1083 = vrot.slane %v1081, 4
      %v1084 = vshll.u32 %v930, 16
      %v1086 = vrot.slane %v1084, 5
      %v1087 = vor.u32 %v1083, %v1086
      %v1088 = vrot.slane %v1087, 4
      %v1090 = vshll.u32 %v931, 16
      %v1092 = vrot.slane %v1090, 5
      %v1093 = vsel %vm231, %v1088, %v1092
      %v1094 = vshrl.u32 %v931, 16
      %v1096 = vrot.slane %v1094, 4
      %v1097 = vor.u32 %v1096, %v1092
      %v1098 = vrot.slane %v1097, 4
      %v1100 = vshll.u32 %v932, 16
      %v1102 = vrot.slane %v1100, 5
      %v1103 = vsel %vm231, %v1098, %v1102
      %v1105 = vshrl.u32 %v933, 16
      %v1107 = vrot.slane %v1105, 4
      %v1108 = vshll.u32 %v933, 16
      %v1110 = vrot.slane %v1108, 5
      %v1111 = vor.u32 %v1107, %v1110
      %v1112 = vrot.slane %v1111, 4
      %v1114 = vshll.u32 %v934, 16
      %v1116 = vrot.slane %v1114, 5
      %v1117 = vsel %vm231, %v1112, %v1116
      %v1118 = vshrl.u32 %v934, 16
      %v1120 = vrot.slane %v1118, 4
      %v1121 = vor.u32 %v1120, %v1116
      %v1122 = vrot.slane %v1121, 4
      %v1124 = vshll.u32 %v935, 16
      %v1126 = vrot.slane %v1124, 5
      %v1127 = vsel %vm231, %v1122, %v1126
      %1128 = vrot.lane.b32.xlu0 %v949, 16
      %v1129 = vpop.permute.xlu0 %1128
      %1130 = vrot.lane.b32.xlu0 %v959, 16
      %v1131 = vpop.permute.xlu0 %1130
      %1132 = vrot.lane.b32.xlu0 %v973, 16
      %v1133 = vpop.permute.xlu0 %1132
      %1134 = vrot.lane.b32.xlu0 %v983, 16
      %v1135 = vpop.permute.xlu0 %1134
      %1136 = vrot.lane.b32.xlu0 %v997, 16
      %v1137 = vpop.permute.xlu0 %1136
      %1138 = vrot.lane.b32.xlu0 %v1007, 16
      %v1139 = vpop.permute.xlu0 %1138
      %1140 = vrot.lane.b32.xlu0 %v1021, 16
      %v1141 = vpop.permute.xlu0 %1140
      %1142 = vrot.lane.b32.xlu0 %v1031, 16
      %v1143 = vpop.permute.xlu0 %1142
      %1144 = vrot.lane.b32.xlu0 %v1045, 16
      %v1145 = vpop.permute.xlu0 %1144
      %1146 = vrot.lane.b32.xlu0 %v1055, 16
      %v1147 = vpop.permute.xlu0 %1146
      %1148 = vrot.lane.b32.xlu0 %v1069, 16
      %v1149 = vpop.permute.xlu0 %1148
      %1150 = vrot.lane.b32.xlu0 %v1079, 16
      %v1151 = vpop.permute.xlu0 %1150
      %1152 = vrot.lane.b32.xlu0 %v1093, 16
      %v1153 = vpop.permute.xlu0 %1152
      %1154 = vrot.lane.b32.xlu0 %v1103, 16
      %v1155 = vpop.permute.xlu0 %1154
      %1156 = vrot.lane.b32.xlu0 %v1117, 16
      %v1157 = vpop.permute.xlu0 %1156
      %1158 = vrot.lane.b32.xlu0 %v1127, 16
      %v1159 = vpop.permute.xlu0 %1158
      %1176 = vst.msk [vmem:[#allocation2] sm:$0xf] %vm472, %v1129
      %1177 = vst.msk [vmem:[#allocation2 + $0x4] sm:$0xf] %vm472, %v1131
      %1178 = vst.msk [vmem:[#allocation2 + $0x8] sm:$0xf] %vm472, %v1133
      %1179 = vst.msk [vmem:[#allocation2 + $0xc] sm:$0xf] %vm472, %v1135
      %1180 = vst.msk [vmem:[#allocation2 + $0x10] sm:$0xf] %vm472, %v1137
      %1181 = vst.msk [vmem:[#allocation2 + $0x14] sm:$0xf] %vm472, %v1139
      %1182 = vst.msk [vmem:[#allocation2 + $0x18] sm:$0xf] %vm472, %v1141
      %1183 = vst.msk [vmem:[#allocation2 + $0x1c] sm:$0xf] %vm472, %v1143
      %1184 = vst.msk [vmem:[#allocation2 + $0x20] sm:$0xf] %vm472, %v1145
      %1185 = vst.msk [vmem:[#allocation2 + $0x24] sm:$0xf] %vm472, %v1147
      %1186 = vst.msk [vmem:[#allocation2 + $0x28] sm:$0xf] %vm472, %v1149
      %1187 = vst.msk [vmem:[#allocation2 + $0x2c] sm:$0xf] %vm472, %v1151
      %1188 = vst.msk [vmem:[#allocation2 + $0x30] sm:$0xf] %vm472, %v1153
      %1189 = vst.msk [vmem:[#allocation2 + $0x34] sm:$0xf] %vm472, %v1155
      %1190 = vst.msk [vmem:[#allocation2 + $0x38] sm:$0xf] %vm472, %v1157
      %1191 = vst.msk [vmem:[#allocation2 + $0x3c] sm:$0xf] %vm472, %v1159
      %v1192 = vld [vmem:[%s879] sm:$0xe]
      %v1193 = vld [vmem:[%s879 + $0x4] sm:$0xf]
      %v1194 = vld [vmem:[%s879 + $0x8] sm:$0x1]
      %v1195 = vld [vmem:[%s879 + $0xc] sm:$0xe]
      %v1196 = vld [vmem:[%s879 + $0x10] sm:$0xf]
      %v1197 = vld [vmem:[%s879 + $0x14] sm:$0x1]
      %v1198 = vld [vmem:[%s879 + $0x18] sm:$0xe]
      %v1199 = vld [vmem:[%s879 + $0x1c] sm:$0xf]
      %v1200 = vld [vmem:[%s879 + $0x20] sm:$0x1]
      %v1201 = vld [vmem:[%s879 + $0x24] sm:$0xe]
      %v1202 = vld [vmem:[%s879 + $0x28] sm:$0xf]
      %v1203 = vld [vmem:[%s879 + $0x2c] sm:$0x1]
      %v1204 = vld [vmem:[%s879 + $0x30] sm:$0xe]
      %v1205 = vld [vmem:[%s879 + $0x34] sm:$0xf]
      %v1206 = vld [vmem:[%s879 + $0x38] sm:$0x1]
      %v1207 = vld [vmem:[%s879 + $0x3c] sm:$0xe]
      %v1208 = vld [vmem:[%s879 + $0x40] sm:$0xf]
      %v1209 = vld [vmem:[%s879 + $0x44] sm:$0x1]
      %v1210 = vld [vmem:[%s879 + $0x48] sm:$0xe]
      %v1211 = vld [vmem:[%s879 + $0x4c] sm:$0xf]
      %v1212 = vld [vmem:[%s879 + $0x50] sm:$0x1]
      %v1213 = vld [vmem:[%s879 + $0x54] sm:$0xe]
      %v1214 = vld [vmem:[%s879 + $0x58] sm:$0xf]
      %v1215 = vld [vmem:[%s879 + $0x5c] sm:$0x1]
      %v1240 = vrot.slane %v1192, 5
      %v1241 = vrot.slane %v1240, 4
      %v1242 = vrot.slane %v1193, 5
      %v1243 = vsel %vm539, %v1241, %v1242
      %v1244 = vrot.slane %v1242, 4
      %v1245 = vrot.slane %v1194, 5
      %v1246 = vsel %vm539, %v1244, %v1245
      %v1247 = vrot.slane %v1195, 5
      %v1248 = vrot.slane %v1247, 4
      %v1249 = vrot.slane %v1196, 5
      %v1250 = vsel %vm539, %v1248, %v1249
      %v1251 = vrot.slane %v1249, 4
      %v1252 = vrot.slane %v1197, 5
      %v1253 = vsel %vm539, %v1251, %v1252
      %v1254 = vrot.slane %v1198, 5
      %v1255 = vrot.slane %v1254, 4
      %v1256 = vrot.slane %v1199, 5
      %v1257 = vsel %vm539, %v1255, %v1256
      %v1258 = vrot.slane %v1256, 4
      %v1259 = vrot.slane %v1200, 5
      %v1260 = vsel %vm539, %v1258, %v1259
      %v1261 = vrot.slane %v1201, 5
      %v1262 = vrot.slane %v1261, 4
      %v1263 = vrot.slane %v1202, 5
      %v1264 = vsel %vm539, %v1262, %v1263
      %v1265 = vrot.slane %v1263, 4
      %v1266 = vrot.slane %v1203, 5
      %v1267 = vsel %vm539, %v1265, %v1266
      %v1268 = vrot.slane %v1204, 5
      %v1269 = vrot.slane %v1268, 4
      %v1270 = vrot.slane %v1205, 5
      %v1271 = vsel %vm539, %v1269, %v1270
      %v1272 = vrot.slane %v1270, 4
      %v1273 = vrot.slane %v1206, 5
      %v1274 = vsel %vm539, %v1272, %v1273
      %v1275 = vrot.slane %v1207, 5
      %v1276 = vrot.slane %v1275, 4
      %v1277 = vrot.slane %v1208, 5
      %v1278 = vsel %vm539, %v1276, %v1277
      %v1279 = vrot.slane %v1277, 4
      %v1280 = vrot.slane %v1209, 5
      %v1281 = vsel %vm539, %v1279, %v1280
      %v1282 = vrot.slane %v1210, 5
      %v1283 = vrot.slane %v1282, 4
      %v1284 = vrot.slane %v1211, 5
      %v1285 = vsel %vm539, %v1283, %v1284
      %v1286 = vrot.slane %v1284, 4
      %v1287 = vrot.slane %v1212, 5
      %v1288 = vsel %vm539, %v1286, %v1287
      %v1289 = vrot.slane %v1213, 5
      %v1290 = vrot.slane %v1289, 4
      %v1291 = vrot.slane %v1214, 5
      %v1292 = vsel %vm539, %v1290, %v1291
      %v1293 = vrot.slane %v1291, 4
      %v1294 = vrot.slane %v1215, 5
      %v1295 = vsel %vm539, %v1293, %v1294
      %1296 = vrot.lane.b32.xlu0 %v1243, 32
      %v1297 = vpop.permute.xlu0 %1296
      %1298 = vrot.lane.b32.xlu0 %v1246, 32
      %v1299 = vpop.permute.xlu0 %1298
      %1300 = vrot.lane.b32.xlu0 %v1250, 32
      %v1301 = vpop.permute.xlu0 %1300
      %1302 = vrot.lane.b32.xlu0 %v1253, 32
      %v1303 = vpop.permute.xlu0 %1302
      %1304 = vrot.lane.b32.xlu0 %v1257, 32
      %v1305 = vpop.permute.xlu0 %1304
      %1306 = vrot.lane.b32.xlu0 %v1260, 32
      %v1307 = vpop.permute.xlu0 %1306
      %1308 = vrot.lane.b32.xlu0 %v1264, 32
      %v1309 = vpop.permute.xlu0 %1308
      %1310 = vrot.lane.b32.xlu0 %v1267, 32
      %v1311 = vpop.permute.xlu0 %1310
      %1312 = vrot.lane.b32.xlu0 %v1271, 32
      %v1313 = vpop.permute.xlu0 %1312
      %1314 = vrot.lane.b32.xlu0 %v1274, 32
      %v1315 = vpop.permute.xlu0 %1314
      %1316 = vrot.lane.b32.xlu0 %v1278, 32
      %v1317 = vpop.permute.xlu0 %1316
      %1318 = vrot.lane.b32.xlu0 %v1281, 32
      %v1319 = vpop.permute.xlu0 %1318
      %1320 = vrot.lane.b32.xlu0 %v1285, 32
      %v1321 = vpop.permute.xlu0 %1320
      %1322 = vrot.lane.b32.xlu0 %v1288, 32
      %v1323 = vpop.permute.xlu0 %1322
      %1324 = vrot.lane.b32.xlu0 %v1292, 32
      %v1325 = vpop.permute.xlu0 %1324
      %1326 = vrot.lane.b32.xlu0 %v1295, 32
      %v1327 = vpop.permute.xlu0 %1326
      %1344 = vst.msk [vmem:[#allocation2] sm:$0xf] %vm644, %v1297
      %1345 = vst.msk [vmem:[#allocation2 + $0x4] sm:$0xf] %vm644, %v1299
      %1346 = vst.msk [vmem:[#allocation2 + $0x8] sm:$0xf] %vm644, %v1301
      %1347 = vst.msk [vmem:[#allocation2 + $0xc] sm:$0xf] %vm644, %v1303
      %1348 = vst.msk [vmem:[#allocation2 + $0x10] sm:$0xf] %vm644, %v1305
      %1349 = vst.msk [vmem:[#allocation2 + $0x14] sm:$0xf] %vm644, %v1307
      %1350 = vst.msk [vmem:[#allocation2 + $0x18] sm:$0xf] %vm644, %v1309
      %1351 = vst.msk [vmem:[#allocation2 + $0x1c] sm:$0xf] %vm644, %v1311
      %1352 = vst.msk [vmem:[#allocation2 + $0x20] sm:$0xf] %vm644, %v1313
      %1353 = vst.msk [vmem:[#allocation2 + $0x24] sm:$0xf] %vm644, %v1315
      %1354 = vst.msk [vmem:[#allocation2 + $0x28] sm:$0xf] %vm644, %v1317
      %1355 = vst.msk [vmem:[#allocation2 + $0x2c] sm:$0xf] %vm644, %v1319
      %1356 = vst.msk [vmem:[#allocation2 + $0x30] sm:$0xf] %vm644, %v1321
      %1357 = vst.msk [vmem:[#allocation2 + $0x34] sm:$0xf] %vm644, %v1323
      %1358 = vst.msk [vmem:[#allocation2 + $0x38] sm:$0xf] %vm644, %v1325
      %1359 = vst.msk [vmem:[#allocation2 + $0x3c] sm:$0xf] %vm644, %v1327
      %v1360 = vld [vmem:[#allocation2] sm:$0xf]
      %v1361 = vld [vmem:[#allocation2 + $0x4] sm:$0xf]
      %v1362 = vld [vmem:[#allocation2 + $0x8] sm:$0xf]
      %v1363 = vld [vmem:[#allocation2 + $0xc] sm:$0xf]
      %v1364 = vld [vmem:[#allocation2 + $0x10] sm:$0xf]
      %v1365 = vld [vmem:[#allocation2 + $0x14] sm:$0xf]
      %v1366 = vld [vmem:[#allocation2 + $0x18] sm:$0xf]
      %v1367 = vld [vmem:[#allocation2 + $0x1c] sm:$0xf]
      %v1368 = vld [vmem:[#allocation2 + $0x20] sm:$0xf]
      %v1369 = vld [vmem:[#allocation2 + $0x24] sm:$0xf]
      %v1370 = vld [vmem:[#allocation2 + $0x28] sm:$0xf]
      %v1371 = vld [vmem:[#allocation2 + $0x2c] sm:$0xf]
      %v1372 = vld [vmem:[#allocation2 + $0x30] sm:$0xf]
      %v1373 = vld [vmem:[#allocation2 + $0x34] sm:$0xf]
      %v1374 = vld [vmem:[#allocation2 + $0x38] sm:$0xf]
      %v1375 = vld [vmem:[#allocation2 + $0x3c] sm:$0xf]
      %s1376 = scalar_lea.vmem %s1, 24
      %v1377 = vld [vmem:[%s1376] sm:$0xf]
      %v1378 = vld [vmem:[%s1376 + $0x4] sm:$0xf]
      %v1379 = vld [vmem:[%s1376 + $0x8] sm:$0xf]
      %v1380 = vld [vmem:[%s1376 + $0xc] sm:$0xf]
      %v1381 = vld [vmem:[%s1376 + $0x10] sm:$0xf]
      %v1382 = vld [vmem:[%s1376 + $0x14] sm:$0xf]
      %v1399 = vunpack.c.l.b16 %v1360
      %v1400 = vunpack.c.l.b16 %v1361
      %v1401 = vunpack.c.l.b16 %v1362
      %v1402 = vunpack.c.l.b16 %v1363
      %v1403 = vunpack.c.l.b16 %v1364
      %v1404 = vunpack.c.l.b16 %v1365
      %v1405 = vunpack.c.l.b16 %v1366
      %v1406 = vunpack.c.l.b16 %v1367
      %v1407 = vunpack.c.l.b16 %v1368
      %v1408 = vunpack.c.l.b16 %v1369
      %v1409 = vunpack.c.l.b16 %v1370
      %v1410 = vunpack.c.l.b16 %v1371
      %v1411 = vunpack.c.l.b16 %v1372
      %v1412 = vunpack.c.l.b16 %v1373
      %v1413 = vunpack.c.l.b16 %v1374
      %v1414 = vunpack.c.l.b16 %v1375
      %v1415 = vpack.c.b16 %v1400, %v1399
      %v1416 = vpack.c.b16 %v1402, %v1401
      %v1417 = vpack.c.b16 %v1404, %v1403
      %v1418 = vpack.c.b16 %v1406, %v1405
      %v1419 = vpack.c.b16 %v1408, %v1407
      %v1420 = vpack.c.b16 %v1410, %v1409
      %v1421 = vpack.c.b16 %v1412, %v1411
      %v1422 = vpack.c.b16 %v1414, %v1413
      %v1429 = vunpack.c.l.b16 %v1377
      %v1430 = vunpack.c.l.b16 %v1378
      %v1431 = vunpack.c.l.b16 %v1379
      %v1432 = vunpack.c.l.b16 %v1380
      %v1433 = vunpack.c.l.b16 %v1381
      %v1434 = vunpack.c.l.b16 %v1382
      %v1435 = vpack.c.b16 %v1430, %v1429
      %v1436 = vpack.c.b16 %v1432, %v1431
      %v1437 = vpack.c.b16 %v1434, %v1433
      %v1442 = vsel %vm741, %v1415, 0
      %v1445 = vsel %vm741, %v1416, 0
      %v1448 = vsel %vm741, %v1417, 0
      %v1451 = vsel %vm741, %v1418, 0
      %v1454 = vsel %vm741, %v1419, 0
      %v1457 = vsel %vm741, %v1420, 0
      %v1460 = vsel %vm741, %v1421, 0
      %v1463 = vsel %vm741, %v1422, 0
      %1465 = vmatprep.subr.bf16.mxu0 0
      %1466 = vmatpush1.bf16.msra.mxu0 0
      %1467 = vmatprep.subr.bf16.mxu0 0
      %1468 = vmatpush1.bf16.msra.mxu0 0
      %1469 = vmatprep.subr.bf16.mxu0 0
      %1470 = vmatpush1.bf16.msra.mxu0 0
      %1471 = vmatprep.subr.bf16.mxu0 0
      %1472 = vmatpush1.bf16.msra.mxu0 0
      %1473 = vmatprep.subr.bf16.mxu0 0
      %1474 = vmatpush1.bf16.msra.mxu0 0
      %1475 = vmatprep.subr.bf16.mxu0 0
      %1476 = vmatpush1.bf16.msra.mxu0 %v1437
      %1477 = vmatprep.subr.bf16.mxu0 0
      %1478 = vmatpush1.bf16.msra.mxu0 %v1436
      %1479 = vmatprep.subr.bf16.mxu0 0
      %1480 = vmatpush1.bf16.msra.mxu0 %v1435
      %1481 = vmatprep.subr.bf16.mxu0 0
      %1482 = vmatpush2.bf16.msra.mxu0 0
      %1483 = vmatprep.subr.bf16.mxu0 0
      %1484 = vmatpush2.bf16.msra.mxu0 0
      %1485 = vmatprep.subr.bf16.mxu0 0
      %1486 = vmatpush2.bf16.msra.mxu0 0
      %1487 = vmatprep.subr.bf16.mxu0 0
      %1488 = vmatpush2.bf16.msra.mxu0 0
      %1489 = vmatprep.subr.bf16.mxu0 0
      %1490 = vmatpush2.bf16.msra.mxu0 0
      %1491 = vmatprep.subr.bf16.mxu0 0
      %1492 = vmatpush2.bf16.msra.mxu0 0
      %1493 = vmatprep.subr.bf16.mxu0 0
      %1494 = vmatpush2.bf16.msra.mxu0 0
      %1495 = vmatprep.subr.bf16.mxu0 0
      %1496 = vmatpush2.bf16.msra.mxu0 0
      %1497 = vmatprep.mubr.bf16.mxu0 0
      %1498 = vmatmul.mubr.bf16.gmra.mxu0 %v1442
      %v1499 = vpop.f32.mrf.mxu0
      %v1500 = vadd.f32 0.0, %v1499
      %v1501 = vpop.f32.mrf.mxu0
      %v1502 = vpop.f32.mrf.mxu0
      %v1503 = vadd.f32 0.0, %v1502
      %v1504 = vpop.f32.mrf.mxu0
      %1505 = vmatprep.mubr.bf16.mxu0 0
      %1506 = vmatmul.mubr.bf16.gmra.mxu0 %v1445
      %v1507 = vpop.f32.mrf.mxu0
      %v1508 = vadd.f32 0.0, %v1507
      %v1509 = vpop.f32.mrf.mxu0
      %v1510 = vpop.f32.mrf.mxu0
      %v1511 = vadd.f32 0.0, %v1510
      %v1512 = vpop.f32.mrf.mxu0
      %1513 = vmatprep.mubr.bf16.mxu0 0
      %1514 = vmatmul.mubr.bf16.gmra.mxu0 %v1448
      %v1515 = vpop.f32.mrf.mxu0
      %v1516 = vadd.f32 0.0, %v1515
      %v1517 = vpop.f32.mrf.mxu0
      %v1518 = vpop.f32.mrf.mxu0
      %v1519 = vadd.f32 0.0, %v1518
      %v1520 = vpop.f32.mrf.mxu0
      %1521 = vmatprep.mubr.bf16.mxu0 0
      %1522 = vmatmul.mubr.bf16.gmra.mxu0 %v1451
      %v1523 = vpop.f32.mrf.mxu0
      %v1524 = vadd.f32 0.0, %v1523
      %v1525 = vpop.f32.mrf.mxu0
      %v1526 = vpop.f32.mrf.mxu0
      %v1527 = vadd.f32 0.0, %v1526
      %v1528 = vpop.f32.mrf.mxu0
      %1529 = vmatprep.mubr.bf16.mxu0 0
      %1530 = vmatmul.mubr.bf16.gmra.mxu0 %v1454
      %v1531 = vpop.f32.mrf.mxu0
      %v1532 = vadd.f32 0.0, %v1531
      %v1533 = vpop.f32.mrf.mxu0
      %v1534 = vpop.f32.mrf.mxu0
      %v1535 = vadd.f32 0.0, %v1534
      %v1536 = vpop.f32.mrf.mxu0
      %1537 = vmatprep.mubr.bf16.mxu0 0
      %1538 = vmatmul.mubr.bf16.gmra.mxu0 %v1457
      %v1539 = vpop.f32.mrf.mxu0
      %v1540 = vadd.f32 0.0, %v1539
      %v1541 = vpop.f32.mrf.mxu0
      %v1542 = vpop.f32.mrf.mxu0
      %v1543 = vadd.f32 0.0, %v1542
      %v1544 = vpop.f32.mrf.mxu0
      %1545 = vmatprep.mubr.bf16.mxu0 0
      %1546 = vmatmul.mubr.bf16.gmra.mxu0 %v1460
      %v1547 = vpop.f32.mrf.mxu0
      %v1548 = vadd.f32 0.0, %v1547
      %v1549 = vpop.f32.mrf.mxu0
      %v1550 = vpop.f32.mrf.mxu0
      %v1551 = vadd.f32 0.0, %v1550
      %v1552 = vpop.f32.mrf.mxu0
      %1553 = vmatprep.mubr.bf16.mxu0 0
      %1554 = vmatmul.mubr.bf16.gmra.mxu0 %v1463
      %v1555 = vpop.f32.mrf.mxu0
      %v1556 = vadd.f32 0.0, %v1555
      %v1557 = vpop.f32.mrf.mxu0
      %v1558 = vpop.f32.mrf.mxu0
      %v1559 = vadd.f32 0.0, %v1558
      %v1560 = vpop.f32.mrf.mxu0
      %1561 = vdwg.mxu0
      %v1562 = vld [vmem:[#allocation3] sm:$0xff]
      %v1563 = vld [vmem:[#allocation3 + $0x8] sm:$0xff]
      %v1564 = vld [vmem:[#allocation3 + $0x10] sm:$0xff]
      %v1565 = vld [vmem:[#allocation3 + $0x18] sm:$0xff]
      %v1566 = vld [vmem:[#allocation3 + $0x20] sm:$0xff]
      %v1567 = vld [vmem:[#allocation3 + $0x28] sm:$0xff]
      %v1568 = vld [vmem:[#allocation3 + $0x30] sm:$0xff]
      %v1569 = vld [vmem:[#allocation3 + $0x38] sm:$0xff]
      %v1570 = vld [vmem:[#allocation3 + $0x40] sm:$0xff]
      %v1571 = vld [vmem:[#allocation3 + $0x48] sm:$0xff]
      %v1572 = vld [vmem:[#allocation3 + $0x50] sm:$0xff]
      %v1573 = vld [vmem:[#allocation3 + $0x58] sm:$0xff]
      %v1574 = vld [vmem:[#allocation3 + $0x60] sm:$0xff]
      %v1575 = vld [vmem:[#allocation3 + $0x68] sm:$0xff]
      %v1576 = vld [vmem:[#allocation3 + $0x70] sm:$0xff]
      %v1577 = vld [vmem:[#allocation3 + $0x78] sm:$0xff]
      %v1578 = vadd.f32 %v1562, %v1500
      %v1579 = vadd.f32 %v1563, %v1503
      %v1580 = vadd.f32 %v1564, %v1508
      %v1581 = vadd.f32 %v1565, %v1511
      %v1582 = vadd.f32 %v1566, %v1516
      %v1583 = vadd.f32 %v1567, %v1519
      %v1584 = vadd.f32 %v1568, %v1524
      %v1585 = vadd.f32 %v1569, %v1527
      %v1586 = vadd.f32 %v1570, %v1532
      %v1587 = vadd.f32 %v1571, %v1535
      %v1588 = vadd.f32 %v1572, %v1540
      %v1589 = vadd.f32 %v1573, %v1543
      %v1590 = vadd.f32 %v1574, %v1548
      %v1591 = vadd.f32 %v1575, %v1551
      %v1592 = vadd.f32 %v1576, %v1556
      %v1593 = vadd.f32 %v1577, %v1559
      %1594 = vst [vmem:[#allocation3] sm:$0xff] %v1578
      %1595 = vst [vmem:[#allocation3 + $0x8] sm:$0xff] %v1579
      %1596 = vst [vmem:[#allocation3 + $0x10] sm:$0xff] %v1580
      %1597 = vst [vmem:[#allocation3 + $0x18] sm:$0xff] %v1581
      %1598 = vst [vmem:[#allocation3 + $0x20] sm:$0xff] %v1582
      %1599 = vst [vmem:[#allocation3 + $0x28] sm:$0xff] %v1583
      %1600 = vst [vmem:[#allocation3 + $0x30] sm:$0xff] %v1584
      %1601 = vst [vmem:[#allocation3 + $0x38] sm:$0xff] %v1585
      %1602 = vst [vmem:[#allocation3 + $0x40] sm:$0xff] %v1586
      %1603 = vst [vmem:[#allocation3 + $0x48] sm:$0xff] %v1587
      %1604 = vst [vmem:[#allocation3 + $0x50] sm:$0xff] %v1588
      %1605 = vst [vmem:[#allocation3 + $0x58] sm:$0xff] %v1589
      %1606 = vst [vmem:[#allocation3 + $0x60] sm:$0xff] %v1590
      %1607 = vst [vmem:[#allocation3 + $0x68] sm:$0xff] %v1591
      %1608 = vst [vmem:[#allocation3 + $0x70] sm:$0xff] %v1592
      %1609 = vst [vmem:[#allocation3 + $0x78] sm:$0xff] %v1593
      %s1610 = scalar_lea.vmem %s165, 24
      %v1611 = vld [vmem:[%s1610] sm:$0xf]
      %v1612 = vld [vmem:[%s1610 + $0x4] sm:$0xf]
      %v1613 = vld [vmem:[%s1610 + $0xc] sm:$0xf]
      %v1614 = vld [vmem:[%s1610 + $0x10] sm:$0xf]
      %v1615 = vld [vmem:[%s1610 + $0x18] sm:$0xf]
      %v1616 = vld [vmem:[%s1610 + $0x1c] sm:$0xf]
      %v1617 = vld [vmem:[%s1610 + $0x24] sm:$0xf]
      %v1618 = vld [vmem:[%s1610 + $0x28] sm:$0xf]
      %v1619 = vld [vmem:[%s1610 + $0x30] sm:$0xf]
      %v1620 = vld [vmem:[%s1610 + $0x34] sm:$0xf]
      %v1621 = vld [vmem:[%s1610 + $0x3c] sm:$0xf]
      %v1622 = vld [vmem:[%s1610 + $0x40] sm:$0xf]
      %v1623 = vld [vmem:[%s1610 + $0x48] sm:$0xf]
      %v1624 = vld [vmem:[%s1610 + $0x4c] sm:$0xf]
      %v1625 = vld [vmem:[%s1610 + $0x54] sm:$0xf]
      %v1626 = vld [vmem:[%s1610 + $0x58] sm:$0xf]
      %1627 = vst.msk [vmem:[#allocation2] sm:$0xf] %vm188, %v1611
      %1628 = vst.msk [vmem:[#allocation2 + $0x4] sm:$0xf] %vm188, %v1612
      %1629 = vst.msk [vmem:[#allocation2 + $0x8] sm:$0xf] %vm188, %v1613
      %1630 = vst.msk [vmem:[#allocation2 + $0xc] sm:$0xf] %vm188, %v1614
      %1631 = vst.msk [vmem:[#allocation2 + $0x10] sm:$0xf] %vm188, %v1615
      %1632 = vst.msk [vmem:[#allocation2 + $0x14] sm:$0xf] %vm188, %v1616
      %1633 = vst.msk [vmem:[#allocation2 + $0x18] sm:$0xf] %vm188, %v1617
      %1634 = vst.msk [vmem:[#allocation2 + $0x1c] sm:$0xf] %vm188, %v1618
      %1635 = vst.msk [vmem:[#allocation2 + $0x20] sm:$0xf] %vm188, %v1619
      %1636 = vst.msk [vmem:[#allocation2 + $0x24] sm:$0xf] %vm188, %v1620
      %1637 = vst.msk [vmem:[#allocation2 + $0x28] sm:$0xf] %vm188, %v1621
      %1638 = vst.msk [vmem:[#allocation2 + $0x2c] sm:$0xf] %vm188, %v1622
      %1639 = vst.msk [vmem:[#allocation2 + $0x30] sm:$0xf] %vm188, %v1623
      %1640 = vst.msk [vmem:[#allocation2 + $0x34] sm:$0xf] %vm188, %v1624
      %1641 = vst.msk [vmem:[#allocation2 + $0x38] sm:$0xf] %vm188, %v1625
      %1642 = vst.msk [vmem:[#allocation2 + $0x3c] sm:$0xf] %vm188, %v1626
      %v1643 = vld [vmem:[%s1610] sm:$0xf]
      %v1644 = vld [vmem:[%s1610 + $0x4] sm:$0xf]
      %v1645 = vld [vmem:[%s1610 + $0x8] sm:$0x1]
      %v1646 = vld [vmem:[%s1610 + $0xc] sm:$0xf]
      %v1647 = vld [vmem:[%s1610 + $0x10] sm:$0xf]
      %v1648 = vld [vmem:[%s1610 + $0x14] sm:$0x1]
      %v1649 = vld [vmem:[%s1610 + $0x18] sm:$0xf]
      %v1650 = vld [vmem:[%s1610 + $0x1c] sm:$0xf]
      %v1651 = vld [vmem:[%s1610 + $0x20] sm:$0x1]
      %v1652 = vld [vmem:[%s1610 + $0x24] sm:$0xf]
      %v1653 = vld [vmem:[%s1610 + $0x28] sm:$0xf]
      %v1654 = vld [vmem:[%s1610 + $0x2c] sm:$0x1]
      %v1655 = vld [vmem:[%s1610 + $0x30] sm:$0xf]
      %v1656 = vld [vmem:[%s1610 + $0x34] sm:$0xf]
      %v1657 = vld [vmem:[%s1610 + $0x38] sm:$0x1]
      %v1658 = vld [vmem:[%s1610 + $0x3c] sm:$0xf]
      %v1659 = vld [vmem:[%s1610 + $0x40] sm:$0xf]
      %v1660 = vld [vmem:[%s1610 + $0x44] sm:$0x1]
      %v1661 = vld [vmem:[%s1610 + $0x48] sm:$0xf]
      %v1662 = vld [vmem:[%s1610 + $0x4c] sm:$0xf]
      %v1663 = vld [vmem:[%s1610 + $0x50] sm:$0x1]
      %v1664 = vld [vmem:[%s1610 + $0x54] sm:$0xf]
      %v1665 = vld [vmem:[%s1610 + $0x58] sm:$0xf]
      %v1666 = vld [vmem:[%s1610 + $0x5c] sm:$0x1]
      %v1668 = vshrl.u32 %v1643, 16
      %v1670 = vrot.slane %v1668, 4
      %v1671 = vshll.u32 %v1643, 16
      %v1673 = vrot.slane %v1671, 5
      %v1674 = vor.u32 %v1670, %v1673
      %v1675 = vrot.slane %v1674, 4
      %v1677 = vshll.u32 %v1644, 16
      %v1679 = vrot.slane %v1677, 5
      %v1680 = vsel %vm231, %v1675, %v1679
      %v1681 = vshrl.u32 %v1644, 16
      %v1683 = vrot.slane %v1681, 4
      %v1684 = vor.u32 %v1683, %v1679
      %v1685 = vrot.slane %v1684, 4
      %v1687 = vshll.u32 %v1645, 16
      %v1689 = vrot.slane %v1687, 5
      %v1690 = vsel %vm231, %v1685, %v1689
      %v1692 = vshrl.u32 %v1646, 16
      %v1694 = vrot.slane %v1692, 4
      %v1695 = vshll.u32 %v1646, 16
      %v1697 = vrot.slane %v1695, 5
      %v1698 = vor.u32 %v1694, %v1697
      %v1699 = vrot.slane %v1698, 4
      %v1701 = vshll.u32 %v1647, 16
      %v1703 = vrot.slane %v1701, 5
      %v1704 = vsel %vm231, %v1699, %v1703
      %v1705 = vshrl.u32 %v1647, 16
      %v1707 = vrot.slane %v1705, 4
      %v1708 = vor.u32 %v1707, %v1703
      %v1709 = vrot.slane %v1708, 4
      %v1711 = vshll.u32 %v1648, 16
      %v1713 = vrot.slane %v1711, 5
      %v1714 = vsel %vm231, %v1709, %v1713
      %v1716 = vshrl.u32 %v1649, 16
      %v1718 = vrot.slane %v1716, 4
      %v1719 = vshll.u32 %v1649, 16
      %v1721 = vrot.slane %v1719, 5
      %v1722 = vor.u32 %v1718, %v1721
      %v1723 = vrot.slane %v1722, 4
      %v1725 = vshll.u32 %v1650, 16
      %v1727 = vrot.slane %v1725, 5
      %v1728 = vsel %vm231, %v1723, %v1727
      %v1729 = vshrl.u32 %v1650, 16
      %v1731 = vrot.slane %v1729, 4
      %v1732 = vor.u32 %v1731, %v1727
      %v1733 = vrot.slane %v1732, 4
      %v1735 = vshll.u32 %v1651, 16
      %v1737 = vrot.slane %v1735, 5
      %v1738 = vsel %vm231, %v1733, %v1737
      %v1740 = vshrl.u32 %v1652, 16
      %v1742 = vrot.slane %v1740, 4
      %v1743 = vshll.u32 %v1652, 16
      %v1745 = vrot.slane %v1743, 5
      %v1746 = vor.u32 %v1742, %v1745
      %v1747 = vrot.slane %v1746, 4
      %v1749 = vshll.u32 %v1653, 16
      %v1751 = vrot.slane %v1749, 5
      %v1752 = vsel %vm231, %v1747, %v1751
      %v1753 = vshrl.u32 %v1653, 16
      %v1755 = vrot.slane %v1753, 4
      %v1756 = vor.u32 %v1755, %v1751
      %v1757 = vrot.slane %v1756, 4
      %v1759 = vshll.u32 %v1654, 16
      %v1761 = vrot.slane %v1759, 5
      %v1762 = vsel %vm231, %v1757, %v1761
      %v1764 = vshrl.u32 %v1655, 16
      %v1766 = vrot.slane %v1764, 4
      %v1767 = vshll.u32 %v1655, 16
      %v1769 = vrot.slane %v1767, 5
      %v1770 = vor.u32 %v1766, %v1769
      %v1771 = vrot.slane %v1770, 4
      %v1773 = vshll.u32 %v1656, 16
      %v1775 = vrot.slane %v1773, 5
      %v1776 = vsel %vm231, %v1771, %v1775
      %v1777 = vshrl.u32 %v1656, 16
      %v1779 = vrot.slane %v1777, 4
      %v1780 = vor.u32 %v1779, %v1775
      %v1781 = vrot.slane %v1780, 4
      %v1783 = vshll.u32 %v1657, 16
      %v1785 = vrot.slane %v1783, 5
      %v1786 = vsel %vm231, %v1781, %v1785
      %v1788 = vshrl.u32 %v1658, 16
      %v1790 = vrot.slane %v1788, 4
      %v1791 = vshll.u32 %v1658, 16
      %v1793 = vrot.slane %v1791, 5
      %v1794 = vor.u32 %v1790, %v1793
      %v1795 = vrot.slane %v1794, 4
      %v1797 = vshll.u32 %v1659, 16
      %v1799 = vrot.slane %v1797, 5
      %v1800 = vsel %vm231, %v1795, %v1799
      %v1801 = vshrl.u32 %v1659, 16
      %v1803 = vrot.slane %v1801, 4
      %v1804 = vor.u32 %v1803, %v1799
      %v1805 = vrot.slane %v1804, 4
      %v1807 = vshll.u32 %v1660, 16
      %v1809 = vrot.slane %v1807, 5
      %v1810 = vsel %vm231, %v1805, %v1809
      %v1812 = vshrl.u32 %v1661, 16
      %v1814 = vrot.slane %v1812, 4
      %v1815 = vshll.u32 %v1661, 16
      %v1817 = vrot.slane %v1815, 5
      %v1818 = vor.u32 %v1814, %v1817
      %v1819 = vrot.slane %v1818, 4
      %v1821 = vshll.u32 %v1662, 16
      %v1823 = vrot.slane %v1821, 5
      %v1824 = vsel %vm231, %v1819, %v1823
      %v1825 = vshrl.u32 %v1662, 16
      %v1827 = vrot.slane %v1825, 4
      %v1828 = vor.u32 %v1827, %v1823
      %v1829 = vrot.slane %v1828, 4
      %v1831 = vshll.u32 %v1663, 16
      %v1833 = vrot.slane %v1831, 5
      %v1834 = vsel %vm231, %v1829, %v1833
      %v1836 = vshrl.u32 %v1664, 16
      %v1838 = vrot.slane %v1836, 4
      %v1839 = vshll.u32 %v1664, 16
      %v1841 = vrot.slane %v1839, 5
      %v1842 = vor.u32 %v1838, %v1841
      %v1843 = vrot.slane %v1842, 4
      %v1845 = vshll.u32 %v1665, 16
      %v1847 = vrot.slane %v1845, 5
      %v1848 = vsel %vm231, %v1843, %v1847
      %v1849 = vshrl.u32 %v1665, 16
      %v1851 = vrot.slane %v1849, 4
      %v1852 = vor.u32 %v1851, %v1847
      %v1853 = vrot.slane %v1852, 4
      %v1855 = vshll.u32 %v1666, 16
      %v1857 = vrot.slane %v1855, 5
      %v1858 = vsel %vm231, %v1853, %v1857
      %1859 = vrot.lane.b32.xlu0 %v1680, 16
      %v1860 = vpop.permute.xlu0 %1859
      %1861 = vrot.lane.b32.xlu0 %v1690, 16
      %v1862 = vpop.permute.xlu0 %1861
      %1863 = vrot.lane.b32.xlu0 %v1704, 16
      %v1864 = vpop.permute.xlu0 %1863
      %1865 = vrot.lane.b32.xlu0 %v1714, 16
      %v1866 = vpop.permute.xlu0 %1865
      %1867 = vrot.lane.b32.xlu0 %v1728, 16
      %v1868 = vpop.permute.xlu0 %1867
      %1869 = vrot.lane.b32.xlu0 %v1738, 16
      %v1870 = vpop.permute.xlu0 %1869
      %1871 = vrot.lane.b32.xlu0 %v1752, 16
      %v1872 = vpop.permute.xlu0 %1871
      %1873 = vrot.lane.b32.xlu0 %v1762, 16
      %v1874 = vpop.permute.xlu0 %1873
      %1875 = vrot.lane.b32.xlu0 %v1776, 16
      %v1876 = vpop.permute.xlu0 %1875
      %1877 = vrot.lane.b32.xlu0 %v1786, 16
      %v1878 = vpop.permute.xlu0 %1877
      %1879 = vrot.lane.b32.xlu0 %v1800, 16
      %v1880 = vpop.permute.xlu0 %1879
      %1881 = vrot.lane.b32.xlu0 %v1810, 16
      %v1882 = vpop.permute.xlu0 %1881
      %1883 = vrot.lane.b32.xlu0 %v1824, 16
      %v1884 = vpop.permute.xlu0 %1883
      %1885 = vrot.lane.b32.xlu0 %v1834, 16
      %v1886 = vpop.permute.xlu0 %1885
      %1887 = vrot.lane.b32.xlu0 %v1848, 16
      %v1888 = vpop.permute.xlu0 %1887
      %1889 = vrot.lane.b32.xlu0 %v1858, 16
      %v1890 = vpop.permute.xlu0 %1889
      %1907 = vst.msk [vmem:[#allocation2] sm:$0xf] %vm472, %v1860
      %1908 = vst.msk [vmem:[#allocation2 + $0x4] sm:$0xf] %vm472, %v1862
      %1909 = vst.msk [vmem:[#allocation2 + $0x8] sm:$0xf] %vm472, %v1864
      %1910 = vst.msk [vmem:[#allocation2 + $0xc] sm:$0xf] %vm472, %v1866
      %1911 = vst.msk [vmem:[#allocation2 + $0x10] sm:$0xf] %vm472, %v1868
      %1912 = vst.msk [vmem:[#allocation2 + $0x14] sm:$0xf] %vm472, %v1870
      %1913 = vst.msk [vmem:[#allocation2 + $0x18] sm:$0xf] %vm472, %v1872
      %1914 = vst.msk [vmem:[#allocation2 + $0x1c] sm:$0xf] %vm472, %v1874
      %1915 = vst.msk [vmem:[#allocation2 + $0x20] sm:$0xf] %vm472, %v1876
      %1916 = vst.msk [vmem:[#allocation2 + $0x24] sm:$0xf] %vm472, %v1878
      %1917 = vst.msk [vmem:[#allocation2 + $0x28] sm:$0xf] %vm472, %v1880
      %1918 = vst.msk [vmem:[#allocation2 + $0x2c] sm:$0xf] %vm472, %v1882
      %1919 = vst.msk [vmem:[#allocation2 + $0x30] sm:$0xf] %vm472, %v1884
      %1920 = vst.msk [vmem:[#allocation2 + $0x34] sm:$0xf] %vm472, %v1886
      %1921 = vst.msk [vmem:[#allocation2 + $0x38] sm:$0xf] %vm472, %v1888
      %1922 = vst.msk [vmem:[#allocation2 + $0x3c] sm:$0xf] %vm472, %v1890
      %v1923 = vld [vmem:[%s1610] sm:$0xe]
      %v1924 = vld [vmem:[%s1610 + $0x4] sm:$0xf]
      %v1925 = vld [vmem:[%s1610 + $0x8] sm:$0x1]
      %v1926 = vld [vmem:[%s1610 + $0xc] sm:$0xe]
      %v1927 = vld [vmem:[%s1610 + $0x10] sm:$0xf]
      %v1928 = vld [vmem:[%s1610 + $0x14] sm:$0x1]
      %v1929 = vld [vmem:[%s1610 + $0x18] sm:$0xe]
      %v1930 = vld [vmem:[%s1610 + $0x1c] sm:$0xf]
      %v1931 = vld [vmem:[%s1610 + $0x20] sm:$0x1]
      %v1932 = vld [vmem:[%s1610 + $0x24] sm:$0xe]
      %v1933 = vld [vmem:[%s1610 + $0x28] sm:$0xf]
      %v1934 = vld [vmem:[%s1610 + $0x2c] sm:$0x1]
      %v1935 = vld [vmem:[%s1610 + $0x30] sm:$0xe]
      %v1936 = vld [vmem:[%s1610 + $0x34] sm:$0xf]
      %v1937 = vld [vmem:[%s1610 + $0x38] sm:$0x1]
      %v1938 = vld [vmem:[%s1610 + $0x3c] sm:$0xe]
      %v1939 = vld [vmem:[%s1610 + $0x40] sm:$0xf]
      %v1940 = vld [vmem:[%s1610 + $0x44] sm:$0x1]
      %v1941 = vld [vmem:[%s1610 + $0x48] sm:$0xe]
      %v1942 = vld [vmem:[%s1610 + $0x4c] sm:$0xf]
      %v1943 = vld [vmem:[%s1610 + $0x50] sm:$0x1]
      %v1944 = vld [vmem:[%s1610 + $0x54] sm:$0xe]
      %v1945 = vld [vmem:[%s1610 + $0x58] sm:$0xf]
      %v1946 = vld [vmem:[%s1610 + $0x5c] sm:$0x1]
      %v1971 = vrot.slane %v1923, 5
      %v1972 = vrot.slane %v1971, 4
      %v1973 = vrot.slane %v1924, 5
      %v1974 = vsel %vm539, %v1972, %v1973
      %v1975 = vrot.slane %v1973, 4
      %v1976 = vrot.slane %v1925, 5
      %v1977 = vsel %vm539, %v1975, %v1976
      %v1978 = vrot.slane %v1926, 5
      %v1979 = vrot.slane %v1978, 4
      %v1980 = vrot.slane %v1927, 5
      %v1981 = vsel %vm539, %v1979, %v1980
      %v1982 = vrot.slane %v1980, 4
      %v1983 = vrot.slane %v1928, 5
      %v1984 = vsel %vm539, %v1982, %v1983
      %v1985 = vrot.slane %v1929, 5
      %v1986 = vrot.slane %v1985, 4
      %v1987 = vrot.slane %v1930, 5
      %v1988 = vsel %vm539, %v1986, %v1987
      %v1989 = vrot.slane %v1987, 4
      %v1990 = vrot.slane %v1931, 5
      %v1991 = vsel %vm539, %v1989, %v1990
      %v1992 = vrot.slane %v1932, 5
      %v1993 = vrot.slane %v1992, 4
      %v1994 = vrot.slane %v1933, 5
      %v1995 = vsel %vm539, %v1993, %v1994
      %v1996 = vrot.slane %v1994, 4
      %v1997 = vrot.slane %v1934, 5
      %v1998 = vsel %vm539, %v1996, %v1997
      %v1999 = vrot.slane %v1935, 5
      %v2000 = vrot.slane %v1999, 4
      %v2001 = vrot.slane %v1936, 5
      %v2002 = vsel %vm539, %v2000, %v2001
      %v2003 = vrot.slane %v2001, 4
      %v2004 = vrot.slane %v1937, 5
      %v2005 = vsel %vm539, %v2003, %v2004
      %v2006 = vrot.slane %v1938, 5
      %v2007 = vrot.slane %v2006, 4
      %v2008 = vrot.slane %v1939, 5
      %v2009 = vsel %vm539, %v2007, %v2008
      %v2010 = vrot.slane %v2008, 4
      %v2011 = vrot.slane %v1940, 5
      %v2012 = vsel %vm539, %v2010, %v2011
      %v2013 = vrot.slane %v1941, 5
      %v2014 = vrot.slane %v2013, 4
      %v2015 = vrot.slane %v1942, 5
      %v2016 = vsel %vm539, %v2014, %v2015
      %v2017 = vrot.slane %v2015, 4
      %v2018 = vrot.slane %v1943, 5
      %v2019 = vsel %vm539, %v2017, %v2018
      %v2020 = vrot.slane %v1944, 5
      %v2021 = vrot.slane %v2020, 4
      %v2022 = vrot.slane %v1945, 5
      %v2023 = vsel %vm539, %v2021, %v2022
      %v2024 = vrot.slane %v2022, 4
      %v2025 = vrot.slane %v1946, 5
      %v2026 = vsel %vm539, %v2024, %v2025
      %2027 = vrot.lane.b32.xlu0 %v1974, 32
      %v2028 = vpop.permute.xlu0 %2027
      %2029 = vrot.lane.b32.xlu0 %v1977, 32
      %v2030 = vpop.permute.xlu0 %2029
      %2031 = vrot.lane.b32.xlu0 %v1981, 32
      %v2032 = vpop.permute.xlu0 %2031
      %2033 = vrot.lane.b32.xlu0 %v1984, 32
      %v2034 = vpop.permute.xlu0 %2033
      %2035 = vrot.lane.b32.xlu0 %v1988, 32
      %v2036 = vpop.permute.xlu0 %2035
      %2037 = vrot.lane.b32.xlu0 %v1991, 32
      %v2038 = vpop.permute.xlu0 %2037
      %2039 = vrot.lane.b32.xlu0 %v1995, 32
      %v2040 = vpop.permute.xlu0 %2039
      %2041 = vrot.lane.b32.xlu0 %v1998, 32
      %v2042 = vpop.permute.xlu0 %2041
      %2043 = vrot.lane.b32.xlu0 %v2002, 32
      %v2044 = vpop.permute.xlu0 %2043
      %2045 = vrot.lane.b32.xlu0 %v2005, 32
      %v2046 = vpop.permute.xlu0 %2045
      %2047 = vrot.lane.b32.xlu0 %v2009, 32
      %v2048 = vpop.permute.xlu0 %2047
      %2049 = vrot.lane.b32.xlu0 %v2012, 32
      %v2050 = vpop.permute.xlu0 %2049
      %2051 = vrot.lane.b32.xlu0 %v2016, 32
      %v2052 = vpop.permute.xlu0 %2051
      %2053 = vrot.lane.b32.xlu0 %v2019, 32
      %v2054 = vpop.permute.xlu0 %2053
      %2055 = vrot.lane.b32.xlu0 %v2023, 32
      %v2056 = vpop.permute.xlu0 %2055
      %2057 = vrot.lane.b32.xlu0 %v2026, 32
      %v2058 = vpop.permute.xlu0 %2057
      %2075 = vst.msk [vmem:[#allocation2] sm:$0xf] %vm644, %v2028
      %2076 = vst.msk [vmem:[#allocation2 + $0x4] sm:$0xf] %vm644, %v2030
      %2077 = vst.msk [vmem:[#allocation2 + $0x8] sm:$0xf] %vm644, %v2032
      %2078 = vst.msk [vmem:[#allocation2 + $0xc] sm:$0xf] %vm644, %v2034
      %2079 = vst.msk [vmem:[#allocation2 + $0x10] sm:$0xf] %vm644, %v2036
      %2080 = vst.msk [vmem:[#allocation2 + $0x14] sm:$0xf] %vm644, %v2038
      %2081 = vst.msk [vmem:[#allocation2 + $0x18] sm:$0xf] %vm644, %v2040
      %2082 = vst.msk [vmem:[#allocation2 + $0x1c] sm:$0xf] %vm644, %v2042
      %2083 = vst.msk [vmem:[#allocation2 + $0x20] sm:$0xf] %vm644, %v2044
      %2084 = vst.msk [vmem:[#allocation2 + $0x24] sm:$0xf] %vm644, %v2046
      %2085 = vst.msk [vmem:[#allocation2 + $0x28] sm:$0xf] %vm644, %v2048
      %2086 = vst.msk [vmem:[#allocation2 + $0x2c] sm:$0xf] %vm644, %v2050
      %2087 = vst.msk [vmem:[#allocation2 + $0x30] sm:$0xf] %vm644, %v2052
      %2088 = vst.msk [vmem:[#allocation2 + $0x34] sm:$0xf] %vm644, %v2054
      %2089 = vst.msk [vmem:[#allocation2 + $0x38] sm:$0xf] %vm644, %v2056
      %2090 = vst.msk [vmem:[#allocation2 + $0x3c] sm:$0xf] %vm644, %v2058
      %v2091 = vld [vmem:[#allocation2] sm:$0xf]
      %v2092 = vld [vmem:[#allocation2 + $0x4] sm:$0xf]
      %v2093 = vld [vmem:[#allocation2 + $0x8] sm:$0xf]
      %v2094 = vld [vmem:[#allocation2 + $0xc] sm:$0xf]
      %v2095 = vld [vmem:[#allocation2 + $0x10] sm:$0xf]
      %v2096 = vld [vmem:[#allocation2 + $0x14] sm:$0xf]
      %v2097 = vld [vmem:[#allocation2 + $0x18] sm:$0xf]
      %v2098 = vld [vmem:[#allocation2 + $0x1c] sm:$0xf]
      %v2099 = vld [vmem:[#allocation2 + $0x20] sm:$0xf]
      %v2100 = vld [vmem:[#allocation2 + $0x24] sm:$0xf]
      %v2101 = vld [vmem:[#allocation2 + $0x28] sm:$0xf]
      %v2102 = vld [vmem:[#allocation2 + $0x2c] sm:$0xf]
      %v2103 = vld [vmem:[#allocation2 + $0x30] sm:$0xf]
      %v2104 = vld [vmem:[#allocation2 + $0x34] sm:$0xf]
      %v2105 = vld [vmem:[#allocation2 + $0x38] sm:$0xf]
      %v2106 = vld [vmem:[#allocation2 + $0x3c] sm:$0xf]
      %s2107 = scalar_lea.vmem %s1, 48
      %v2108 = vld [vmem:[%s2107] sm:$0xf]
      %v2109 = vld [vmem:[%s2107 + $0x4] sm:$0xf]
      %v2110 = vld [vmem:[%s2107 + $0x8] sm:$0xf]
      %v2111 = vld [vmem:[%s2107 + $0xc] sm:$0xf]
      %v2112 = vld [vmem:[%s2107 + $0x10] sm:$0xf]
      %v2113 = vld [vmem:[%s2107 + $0x14] sm:$0xf]
      %v2130 = vunpack.c.l.b16 %v2091
      %v2131 = vunpack.c.l.b16 %v2092
      %v2132 = vunpack.c.l.b16 %v2093
      %v2133 = vunpack.c.l.b16 %v2094
      %v2134 = vunpack.c.l.b16 %v2095
      %v2135 = vunpack.c.l.b16 %v2096
      %v2136 = vunpack.c.l.b16 %v2097
      %v2137 = vunpack.c.l.b16 %v2098
      %v2138 = vunpack.c.l.b16 %v2099
      %v2139 = vunpack.c.l.b16 %v2100
      %v2140 = vunpack.c.l.b16 %v2101
      %v2141 = vunpack.c.l.b16 %v2102
      %v2142 = vunpack.c.l.b16 %v2103
      %v2143 = vunpack.c.l.b16 %v2104
      %v2144 = vunpack.c.l.b16 %v2105
      %v2145 = vunpack.c.l.b16 %v2106
      %v2146 = vpack.c.b16 %v2131, %v2130
      %v2147 = vpack.c.b16 %v2133, %v2132
      %v2148 = vpack.c.b16 %v2135, %v2134
      %v2149 = vpack.c.b16 %v2137, %v2136
      %v2150 = vpack.c.b16 %v2139, %v2138
      %v2151 = vpack.c.b16 %v2141, %v2140
      %v2152 = vpack.c.b16 %v2143, %v2142
      %v2153 = vpack.c.b16 %v2145, %v2144
      %v2160 = vunpack.c.l.b16 %v2108
      %v2161 = vunpack.c.l.b16 %v2109
      %v2162 = vunpack.c.l.b16 %v2110
      %v2163 = vunpack.c.l.b16 %v2111
      %v2164 = vunpack.c.l.b16 %v2112
      %v2165 = vunpack.c.l.b16 %v2113
      %v2166 = vpack.c.b16 %v2161, %v2160
      %v2167 = vpack.c.b16 %v2163, %v2162
      %v2168 = vpack.c.b16 %v2165, %v2164
      %v2173 = vsel %vm741, %v2146, 0
      %v2176 = vsel %vm741, %v2147, 0
      %v2179 = vsel %vm741, %v2148, 0
      %v2182 = vsel %vm741, %v2149, 0
      %v2185 = vsel %vm741, %v2150, 0
      %v2188 = vsel %vm741, %v2151, 0
      %v2191 = vsel %vm741, %v2152, 0
      %v2194 = vsel %vm741, %v2153, 0
      %2196 = vmatprep.subr.bf16.mxu0 0
      %2197 = vmatpush1.bf16.msra.mxu0 0
      %2198 = vmatprep.subr.bf16.mxu0 0
      %2199 = vmatpush1.bf16.msra.mxu0 0
      %2200 = vmatprep.subr.bf16.mxu0 0
      %2201 = vmatpush1.bf16.msra.mxu0 0
      %2202 = vmatprep.subr.bf16.mxu0 0
      %2203 = vmatpush1.bf16.msra.mxu0 0
      %2204 = vmatprep.subr.bf16.mxu0 0
      %2205 = vmatpush1.bf16.msra.mxu0 0
      %2206 = vmatprep.subr.bf16.mxu0 0
      %2207 = vmatpush1.bf16.msra.mxu0 %v2168
      %2208 = vmatprep.subr.bf16.mxu0 0
      %2209 = vmatpush1.bf16.msra.mxu0 %v2167
      %2210 = vmatprep.subr.bf16.mxu0 0
      %2211 = vmatpush1.bf16.msra.mxu0 %v2166
      %2212 = vmatprep.subr.bf16.mxu0 0
      %2213 = vmatpush2.bf16.msra.mxu0 0
      %2214 = vmatprep.subr.bf16.mxu0 0
      %2215 = vmatpush2.bf16.msra.mxu0 0
      %2216 = vmatprep.subr.bf16.mxu0 0
      %2217 = vmatpush2.bf16.msra.mxu0 0
      %2218 = vmatprep.subr.bf16.mxu0 0
      %2219 = vmatpush2.bf16.msra.mxu0 0
      %2220 = vmatprep.subr.bf16.mxu0 0
      %2221 = vmatpush2.bf16.msra.mxu0 0
      %2222 = vmatprep.subr.bf16.mxu0 0
      %2223 = vmatpush2.bf16.msra.mxu0 0
      %2224 = vmatprep.subr.bf16.mxu0 0
      %2225 = vmatpush2.bf16.msra.mxu0 0
      %2226 = vmatprep.subr.bf16.mxu0 0
      %2227 = vmatpush2.bf16.msra.mxu0 0
      %2228 = vmatprep.mubr.bf16.mxu0 0
      %2229 = vmatmul.mubr.bf16.gmra.mxu0 %v2173
      %v2230 = vpop.f32.mrf.mxu0
      %v2231 = vadd.f32 0.0, %v2230
      %v2232 = vpop.f32.mrf.mxu0
      %v2233 = vpop.f32.mrf.mxu0
      %v2234 = vadd.f32 0.0, %v2233
      %v2235 = vpop.f32.mrf.mxu0
      %2236 = vmatprep.mubr.bf16.mxu0 0
      %2237 = vmatmul.mubr.bf16.gmra.mxu0 %v2176
      %v2238 = vpop.f32.mrf.mxu0
      %v2239 = vadd.f32 0.0, %v2238
      %v2240 = vpop.f32.mrf.mxu0
      %v2241 = vpop.f32.mrf.mxu0
      %v2242 = vadd.f32 0.0, %v2241
      %v2243 = vpop.f32.mrf.mxu0
      %2244 = vmatprep.mubr.bf16.mxu0 0
      %2245 = vmatmul.mubr.bf16.gmra.mxu0 %v2179
      %v2246 = vpop.f32.mrf.mxu0
      %v2247 = vadd.f32 0.0, %v2246
      %v2248 = vpop.f32.mrf.mxu0
      %v2249 = vpop.f32.mrf.mxu0
      %v2250 = vadd.f32 0.0, %v2249
      %v2251 = vpop.f32.mrf.mxu0
      %2252 = vmatprep.mubr.bf16.mxu0 0
      %2253 = vmatmul.mubr.bf16.gmra.mxu0 %v2182
      %v2254 = vpop.f32.mrf.mxu0
      %v2255 = vadd.f32 0.0, %v2254
      %v2256 = vpop.f32.mrf.mxu0
      %v2257 = vpop.f32.mrf.mxu0
      %v2258 = vadd.f32 0.0, %v2257
      %v2259 = vpop.f32.mrf.mxu0
      %2260 = vmatprep.mubr.bf16.mxu0 0
      %2261 = vmatmul.mubr.bf16.gmra.mxu0 %v2185
      %v2262 = vpop.f32.mrf.mxu0
      %v2263 = vadd.f32 0.0, %v2262
      %v2264 = vpop.f32.mrf.mxu0
      %v2265 = vpop.f32.mrf.mxu0
      %v2266 = vadd.f32 0.0, %v2265
      %v2267 = vpop.f32.mrf.mxu0
      %2268 = vmatprep.mubr.bf16.mxu0 0
      %2269 = vmatmul.mubr.bf16.gmra.mxu0 %v2188
      %v2270 = vpop.f32.mrf.mxu0
      %v2271 = vadd.f32 0.0, %v2270
      %v2272 = vpop.f32.mrf.mxu0
      %v2273 = vpop.f32.mrf.mxu0
      %v2274 = vadd.f32 0.0, %v2273
      %v2275 = vpop.f32.mrf.mxu0
      %2276 = vmatprep.mubr.bf16.mxu0 0
      %2277 = vmatmul.mubr.bf16.gmra.mxu0 %v2191
      %v2278 = vpop.f32.mrf.mxu0
      %v2279 = vadd.f32 0.0, %v2278
      %v2280 = vpop.f32.mrf.mxu0
      %v2281 = vpop.f32.mrf.mxu0
      %v2282 = vadd.f32 0.0, %v2281
      %v2283 = vpop.f32.mrf.mxu0
      %2284 = vmatprep.mubr.bf16.mxu0 0
      %2285 = vmatmul.mubr.bf16.gmra.mxu0 %v2194
      %v2286 = vpop.f32.mrf.mxu0
      %v2287 = vadd.f32 0.0, %v2286
      %v2288 = vpop.f32.mrf.mxu0
      %v2289 = vpop.f32.mrf.mxu0
      %v2290 = vadd.f32 0.0, %v2289
      %v2291 = vpop.f32.mrf.mxu0
      %2292 = vdwg.mxu0
      %v2293 = vld [vmem:[#allocation3] sm:$0xff]
      %v2294 = vld [vmem:[#allocation3 + $0x8] sm:$0xff]
      %v2295 = vld [vmem:[#allocation3 + $0x10] sm:$0xff]
      %v2296 = vld [vmem:[#allocation3 + $0x18] sm:$0xff]
      %v2297 = vld [vmem:[#allocation3 + $0x20] sm:$0xff]
      %v2298 = vld [vmem:[#allocation3 + $0x28] sm:$0xff]
      %v2299 = vld [vmem:[#allocation3 + $0x30] sm:$0xff]
      %v2300 = vld [vmem:[#allocation3 + $0x38] sm:$0xff]
      %v2301 = vld [vmem:[#allocation3 + $0x40] sm:$0xff]
      %v2302 = vld [vmem:[#allocation3 + $0x48] sm:$0xff]
      %v2303 = vld [vmem:[#allocation3 + $0x50] sm:$0xff]
      %v2304 = vld [vmem:[#allocation3 + $0x58] sm:$0xff]
      %v2305 = vld [vmem:[#allocation3 + $0x60] sm:$0xff]
      %v2306 = vld [vmem:[#allocation3 + $0x68] sm:$0xff]
      %v2307 = vld [vmem:[#allocation3 + $0x70] sm:$0xff]
      %v2308 = vld [vmem:[#allocation3 + $0x78] sm:$0xff]
      %v2309 = vadd.f32 %v2293, %v2231
      %v2310 = vadd.f32 %v2294, %v2234
      %v2311 = vadd.f32 %v2295, %v2239
      %v2312 = vadd.f32 %v2296, %v2242
      %v2313 = vadd.f32 %v2297, %v2247
      %v2314 = vadd.f32 %v2298, %v2250
      %v2315 = vadd.f32 %v2299, %v2255
      %v2316 = vadd.f32 %v2300, %v2258
      %v2317 = vadd.f32 %v2301, %v2263
      %v2318 = vadd.f32 %v2302, %v2266
      %v2319 = vadd.f32 %v2303, %v2271
      %v2320 = vadd.f32 %v2304, %v2274
      %v2321 = vadd.f32 %v2305, %v2279
      %v2322 = vadd.f32 %v2306, %v2282
      %v2323 = vadd.f32 %v2307, %v2287
      %v2324 = vadd.f32 %v2308, %v2290
      %2325 = vst [vmem:[#allocation3] sm:$0xff] %v2309
      %2326 = vst [vmem:[#allocation3 + $0x8] sm:$0xff] %v2310
      %2327 = vst [vmem:[#allocation3 + $0x10] sm:$0xff] %v2311
      %2328 = vst [vmem:[#allocation3 + $0x18] sm:$0xff] %v2312
      %2329 = vst [vmem:[#allocation3 + $0x20] sm:$0xff] %v2313
      %2330 = vst [vmem:[#allocation3 + $0x28] sm:$0xff] %v2314
      %2331 = vst [vmem:[#allocation3 + $0x30] sm:$0xff] %v2315
      %2332 = vst [vmem:[#allocation3 + $0x38] sm:$0xff] %v2316
      %2333 = vst [vmem:[#allocation3 + $0x40] sm:$0xff] %v2317
      %2334 = vst [vmem:[#allocation3 + $0x48] sm:$0xff] %v2318
      %2335 = vst [vmem:[#allocation3 + $0x50] sm:$0xff] %v2319
      %2336 = vst [vmem:[#allocation3 + $0x58] sm:$0xff] %v2320
      %2337 = vst [vmem:[#allocation3 + $0x60] sm:$0xff] %v2321
      %2338 = vst [vmem:[#allocation3 + $0x68] sm:$0xff] %v2322
      %2339 = vst [vmem:[#allocation3 + $0x70] sm:$0xff] %v2323
      %2340 = vst [vmem:[#allocation3 + $0x78] sm:$0xff] %v2324
      %v2341 = vld [vmem:[#allocation3] sm:$0xff]
      %v2342 = vld [vmem:[#allocation3 + $0x8] sm:$0xff]
      %v2343 = vld [vmem:[#allocation3 + $0x10] sm:$0xff]
      %v2344 = vld [vmem:[#allocation3 + $0x18] sm:$0xff]
      %v2345 = vld [vmem:[#allocation3 + $0x20] sm:$0xff]
      %v2346 = vld [vmem:[#allocation3 + $0x28] sm:$0xff]
      %v2347 = vld [vmem:[#allocation3 + $0x30] sm:$0xff]
      %v2348 = vld [vmem:[#allocation3 + $0x38] sm:$0xff]
      %v2349 = vld [vmem:[#allocation3 + $0x40] sm:$0xff]
      %v2350 = vld [vmem:[#allocation3 + $0x48] sm:$0xff]
      %v2351 = vld [vmem:[#allocation3 + $0x50] sm:$0xff]
      %v2352 = vld [vmem:[#allocation3 + $0x58] sm:$0xff]
      %v2353 = vld [vmem:[#allocation3 + $0x60] sm:$0xff]
      %v2354 = vld [vmem:[#allocation3 + $0x68] sm:$0xff]
      %v2355 = vld [vmem:[#allocation3 + $0x70] sm:$0xff]
      %v2356 = vld [vmem:[#allocation3 + $0x78] sm:$0xff]
      %v2357 = vld [vmem:[%s2] sm:$0x1]
      %v2359 = vlaneseq
      %v2360 = vshrl.u32 %v2359, 7
      %v2361 = vsub.s32 0, %v2360
      %v2362 = vrot.slane %v2357, %v2361
      %v2364 = vadd.f32 %v2341, %v2362
      %v2365 = vadd.f32 %v2342, %v2362
      %v2366 = vadd.f32 %v2343, %v2362
      %v2367 = vadd.f32 %v2344, %v2362
      %v2368 = vadd.f32 %v2345, %v2362
      %v2369 = vadd.f32 %v2346, %v2362
      %v2370 = vadd.f32 %v2347, %v2362
      %v2371 = vadd.f32 %v2348, %v2362
      %v2372 = vadd.f32 %v2349, %v2362
      %v2373 = vadd.f32 %v2350, %v2362
      %v2374 = vadd.f32 %v2351, %v2362
      %v2375 = vadd.f32 %v2352, %v2362
      %v2376 = vadd.f32 %v2353, %v2362
      %v2377 = vadd.f32 %v2354, %v2362
      %v2378 = vadd.f32 %v2355, %v2362
      %v2379 = vadd.f32 %v2356, %v2362
      %2380 = vst [vmem:[%s170] sm:$0xff] %v2364
      %2381 = vst [vmem:[%s170 + $0x8] sm:$0xff] %v2365
      %2382 = vst [vmem:[%s170 + $0x10] sm:$0xff] %v2366
      %2383 = vst [vmem:[%s170 + $0x18] sm:$0xff] %v2367
      %2384 = vst [vmem:[%s170 + $0x20] sm:$0xff] %v2368
      %2385 = vst [vmem:[%s170 + $0x28] sm:$0xff] %v2369
      %2386 = vst [vmem:[%s170 + $0x30] sm:$0xff] %v2370
      %2387 = vst [vmem:[%s170 + $0x38] sm:$0xff] %v2371
      %2388 = vst [vmem:[%s170 + $0x40] sm:$0xff] %v2372
      %2389 = vst [vmem:[%s170 + $0x48] sm:$0xff] %v2373
      %2390 = vst [vmem:[%s170 + $0x50] sm:$0xff] %v2374
      %2391 = vst [vmem:[%s170 + $0x58] sm:$0xff] %v2375
      %2392 = vst [vmem:[%s170 + $0x60] sm:$0xff] %v2376
      %2393 = vst [vmem:[%s170 + $0x68] sm:$0xff] %v2377
      %2394 = vst [vmem:[%s170 + $0x70] sm:$0xff] %v2378
      %2395 = vst [vmem:[%s170 + $0x78] sm:$0xff] %v2379
      %p2396 = scmp.lt.s32.totalorder %s14, 3
      %s2397 = scalar_select %p2396, %s14, 3
      %s2398 = smul.addr %s2397, 16
      %s2399 = smul.addr %s2398, 8
      %s2400 = scalar_lea.vmem %s3, %s2399
      // Predicated region
      $region33: #{conv_adapt.1} parent=31 // pred_check
        %p2401 = pneg %p100
      $region34: #{conv_adapt.1} parent=31 // pred_check_branch
        %2403 = sbr.rel (%p2401) target = $region36
      $region35: #{conv_adapt.1} parent=31 // pred_region
        _
      $region36: #{conv_adapt.1} parent=31 // pred_fallthru
        _
    $region32: #{conv_adapt.1} parent=5 // pred_fallthru
      _
    %p2404 = scmp.le.s32.totalorder 2, %s9
    // Predicated region
    $region37: #{conv_adapt.1} parent=5 // pred_check
      %p2405 = pneg %p2404
    $region38: #{conv_adapt.1} parent=5 // pred_check_branch
      %2407 = sbr.rel (%p2405) target = $region40
    $region39: #{conv_adapt.1} parent=5 // pred_region
      %s2408 = ssub.s32 %s9, 2
      // Predicated region
      $region41: #{conv_adapt.1} parent=39 // pred_check
        %p2409 = pneg %p106
      $region42: #{conv_adapt.1} parent=39 // pred_check_branch
        %2411 = sbr.rel (%p2409) target = $region44
      $region43: #{conv_adapt.1} parent=39 // pred_region
        %p2412 = scmp.lt.s32.totalorder %s15, 3
        %s2413 = scalar_select %p2412, %s15, 3
        %s2414 = smul.addr %s2413, 16
        %s2415 = smul.addr %s2414, 8
        %s2416 = scalar_lea.vmem %s3, %s2415
      $region44: #{conv_adapt.1} parent=39 // pred_fallthru
        _
    $region40: #{conv_adapt.1} parent=5 // pred_fallthru
      _
  $region6: #{conv_adapt.1} parent=0 // loop_footer
    %s13 = sadd.s32 1, %s9
  $region7: #{conv_adapt.1} parent=0 // loop_footer_branch
    %8 = sbr.rel target = $region3
  $region8: #{conv_adapt.1} parent=0 // loop_exit
    _

</llo_original>
